<compile_context>
chip_gen: v5e
topology: v5e:2x2
jax: 0.10.0
libtpu: 0.0.40
codegen_flags: <defaults>
</compile_context>

<pallas_src>
import functools

import jax
import jax.numpy as jnp
from jax.experimental import pallas as pl
from jax.experimental.pallas import tpu as pltpu

ALPHA = 0.25
GAMMA = 2.0          # applied as an explicit square below
assert GAMMA == 2.0, "kernel hard-codes (1-p)**GAMMA as a square"
CLAMP_LO = 1e-07
CLAMP_HI = 1.0 - 1e-07


def _ssd_focal_loss_kernel(loc_p_ref, loc_t_ref, cls_p_ref, cls_t_ref, out_ref,
                           *, n_rows, tile_rows, n_tiles):
    """Natural-layout tiles: loc [T,4], cls [T,C], labels [T,1]; out (8,128)."""
    p = pl.program_id(0)                           # parallel axis (megacore)
    i = pl.program_id(1)                           # reduction ("arbitrary") axis

    @pl.when(i == 0)
    def _init():                                   # output block is the accumulator
        out_ref[...] = jnp.zeros_like(out_ref)

    labels = cls_t_ref[...]                        # [T, 1] int32

    # Ragged-tail mask: global row index vs. N (also neutralizes clamped
    # duplicate tail blocks, whose row0 lands past n_rows).
    row0 = (p * n_tiles + i) * tile_rows
    row_ids = row0 + jax.lax.broadcasted_iota(jnp.int32, (tile_rows, 1), 0)
    valid = row_ids < n_rows                       # [T, 1] bool

    pos = valid & (labels > 0)                     # positive anchors
    pos_neg = valid & (labels > -1)                # non-ignored anchors

    # ---- SmoothL1 localization loss (masked by pos), per-row --------------
    d = loc_p_ref[...].astype(jnp.float32) - loc_t_ref[...].astype(jnp.float32)
    abs_d = jnp.abs(d)
    sl1 = jnp.where(abs_d < 1.0, 0.5 * d * d, abs_d - 0.5)              # [T, 4]
    loc_row = jnp.where(pos, jnp.sum(sl1, axis=-1, keepdims=True), 0.0)  # [T, 1]

    # ---- Focal classification loss (masked by pos_neg), per-row -----------
    # One-hot refactor: only the true-class probability contributes, so the
    # [T, C] work stops at the softmax exp; log/clip/square run at [T, 1].
    x = cls_p_ref[...].astype(jnp.float32)                               # [T, C]
    m = jnp.max(x, axis=-1, keepdims=True)                               # [T, 1]
    e = jnp.exp(x - m)                                                   # [T, C]
    s = jnp.sum(e, axis=-1, keepdims=True)                               # [T, 1]
    cids = jax.lax.broadcasted_iota(jnp.int32, x.shape, 1)               # [T, C]
    e_true = jnp.sum(jnp.where(cids == labels, e, 0.0),
                     axis=-1, keepdims=True)                             # [T, 1]
    p_true = e_true * pl.reciprocal(s, approx=False)
    p_true = jnp.clip(p_true, CLAMP_LO, CLAMP_HI)
    q = 1.0 - p_true                                                     # (1-p)**2
    cls_row = jnp.where(pos_neg, ALPHA * (-jnp.log(p_true)) * (q * q), 0.0)

    pos_f = jnp.where(pos, 1.0, 0.0)                                     # [T, 1]

    # ---- Single fused reduce + single fused accumulator RMW ---------------
    col = jax.lax.broadcasted_iota(jnp.int32, (tile_rows, 2), 1)
    stacked = jnp.where(col == 0, loc_row + cls_row, pos_f)              # [T, 2]
    partial = jnp.sum(stacked, axis=0, keepdims=True)                    # [1, 2]
    out_ref[0:1, 0:2] += partial


def _round_up(x, m):
    return ((x + m - 1) // m) * m


def _default_num_parallel():
    # Only v7x-class chips have 2 TensorCores per chip; on single-TC v5e/v6e a
    # parallel axis of size 2 just serializes into two passes (review feedback).
    try:
        kind = jax.devices()[0].device_kind.lower()
        if "v7" in kind or "7x" in kind:
            return 2
    except Exception:
        pass
    return 1


def ssd_focal_loss(loc_preds, loc_targets, cls_preds, cls_targets,
                   *, tile_rows=2048, num_parallel=None):
    """loc_preds/loc_targets: [B, A, 4]; cls_preds: [B, A, C]; cls_targets: [B, A] int
    (-1 = ignore, 0 = background, >0 = positive)."""
    B, A, _ = loc_preds.shape
    C = cls_preds.shape[-1]
    N = B * A

    if num_parallel is None:
        num_parallel = _default_num_parallel()
    if N < 16:                       # too small to split meaningfully/safely
        num_parallel = 1

    # --- VMEM-aware tile sizing (accounts for lane padding and C) ----------
    # Every block narrower than 128 lanes still occupies a full (8,128) f32
    # tile per 8 rows in VMEM, i.e. 512 B/row; the cls block costs
    # ceil(C/128) such tiles per 8 rows.  Double-buffered footprint per step:
    #   2 * tile * 512 * (2[loc] + 1[labels] + ceil(C/128))
    # Keep it under ~12 MiB so it fits the v5e 16 MiB scoped-VMEM default
    # (v6e/v7x scoped default is 32 MiB).
    bytes_per_row = 512 * (3 + pl.cdiv(C, 128))
    vmem_budget = 12 * 1024 * 1024
    t_vmem = max(8, (vmem_budget // (2 * bytes_per_row)) // 8 * 8)
    tile = max(8, min(tile_rows, t_vmem, _round_up(pl.cdiv(N, num_parallel), 8)))

    n_tiles = pl.cdiv(N, num_parallel * tile)
    last_block = pl.cdiv(N, tile) - 1   # last block index that overlaps real rows

    # Natural layout, free reshapes (contiguous leading-dim collapse only).
    loc_p = loc_preds.reshape(N, 4)
    loc_t = loc_targets.reshape(N, 4)
    cls_p = cls_preds.reshape(N, C)
    cls_t = cls_targets.reshape(N, 1).astype(jnp.int32)

    def row_blk(p, i):
        # Clamp so a fully out-of-bounds tail block re-reads the last valid
        # block; the kernel's row mask zeroes its contribution.
        return (jnp.minimum(p * n_tiles + i, last_block), 0)

    kernel = functools.partial(_ssd_focal_loss_kernel,
                               n_rows=N, tile_rows=tile, n_tiles=n_tiles)

    partials = pl.pallas_call(
        kernel,
        out_shape=jax.ShapeDtypeStruct((8 * num_parallel, 128), jnp.float32),
        grid=(num_parallel, n_tiles),
        in_specs=[
            pl.BlockSpec((tile, 4), row_blk),
            pl.BlockSpec((tile, 4), row_blk),
            pl.BlockSpec((tile, C), row_blk),
            pl.BlockSpec((tile, 1), row_blk),
        ],
        out_specs=pl.BlockSpec((8, 128), lambda p, i: (p, 0)),
        compiler_params=pltpu.CompilerParams(
            dimension_semantics=("parallel", "arbitrary")),
    )(loc_p, loc_t, cls_p, cls_t)

    # Tiny epilogue: loss = (loc_loss + cls_loss) / max(1, num_pos).
    parts = partials.reshape(num_parallel, 8, 128)
    loss_sum = jnp.sum(parts[:, 0, 0])
    num_pos = jnp.sum(parts[:, 0, 1])
    return loss_sum / jnp.maximum(1.0, num_pos)


def _reference(loc_preds, loc_targets, cls_preds, cls_targets):
    """Pure-JAX reference mirroring the PyTorch forward."""
    C = cls_preds.shape[-1]
    labels = cls_targets.astype(jnp.int32)
    pos = labels > 0
    pos_neg = labels > -1
    num_pos = jnp.sum(pos.astype(jnp.float32))

    d = loc_preds - loc_targets
    abs_d = jnp.abs(d)
    sl1 = jnp.where(abs_d < 1.0, 0.5 * d * d, abs_d - 0.5)
    loc_loss = jnp.sum(sl1 * pos[..., None].astype(jnp.float32))

    logit = jax.nn.softmax(cls_preds, axis=-1)
    logit = jnp.clip(logit, CLAMP_LO, CLAMP_HI)
    t = jax.nn.one_hot(jnp.maximum(labels, 0), C, dtype=jnp.float32)
    conf = ALPHA * (-t * jnp.log(logit)) * (1.0 - logit) ** GAMMA
    cls_loss = jnp.sum(jnp.sum(conf, axis=-1) * pos_neg.astype(jnp.float32))

    denom = jnp.maximum(1.0, num_pos)
    return (loc_loss + cls_loss) / denom


if __name__ == "__main__":
    # Small, module-consistent shapes: batch=2, anchors=64, num_classes=8.
    B, A, C = 2, 64, 8
    key = jax.random.PRNGKey(0)
    k1, k2, k3, k4 = jax.random.split(key, 4)

    loc_preds = jax.random.normal(k1, (B, A, 4), dtype=jnp.float32)
    loc_targets = jax.random.normal(k2, (B, A, 4), dtype=jnp.float32)
    cls_preds = jax.random.normal(k3, (B, A, C), dtype=jnp.float32)
    # labels in [-1, C-1]: -1 ignore, 0 background, >0 positive
    cls_targets = jax.random.randint(k4, (B, A), -1, C, dtype=jnp.int32)

    loss = ssd_focal_loss(loc_preds, loc_targets, cls_preds, cls_targets)
    loss = jax.block_until_ready(loss)

    ref = _reference(loc_preds, loc_targets, cls_preds, cls_targets)
    assert jnp.allclose(loss, ref, rtol=1e-4, atol=1e-4), (loss, ref)

    # TODO(synk): the PyTorch module's Log.debug of per-term losses is host-side
    # logging with no kernel equivalent; the returned scalar matches the forward.
    print("KERNEL_OK")
</pallas_src>

<mosaic_0001>
module attributes {stable_mosaic.version = 11 : i64} {
  func.func @_ssd_focal_loss_kernel(%arg0: i32, %arg1: i32, %arg2: memref<128x4xf32, #tpu.memory_space<vmem>>, %arg3: memref<128x4xf32, #tpu.memory_space<vmem>>, %arg4: memref<128x8xf32, #tpu.memory_space<vmem>>, %arg5: memref<128x1xi32, #tpu.memory_space<vmem>>, %arg6: memref<8x128xf32, #tpu.memory_space<vmem>>) attributes {dimension_semantics = [#tpu.dimension_semantics<parallel>, #tpu.dimension_semantics<arbitrary>], iteration_bounds = array<i64: 1, 1>, scalar_prefetch = 0 : i64, scratch_operands = 0 : i64, tpu.core_type = #tpu.core_type<tc>, window_params = [{transform_indices = @transform_0, window_bounds = array<i64: 128, 4>}, {transform_indices = @transform_1, window_bounds = array<i64: 128, 4>}, {transform_indices = @transform_2, window_bounds = array<i64: 128, 8>}, {transform_indices = @transform_3, window_bounds = array<i64: 128, 1>}, {transform_indices = @transform_4, window_bounds = array<i64: 8, 128>}]} {
    %c0_i32 = arith.constant 0 : i32
    %0 = arith.cmpi eq, %arg1, %c0_i32 : i32
    %1 = arith.extui %0 : i1 to i32
    %c0_i32_0 = arith.constant 0 : i32
    %2 = arith.cmpi ne, %1, %c0_i32_0 : i32
    scf.if %2 {
      %cst_32 = arith.constant 0.000000e+00 : f32
      %83 = vector.broadcast %cst_32 : f32 to vector<8x128xf32>
      %c0_33 = arith.constant 0 : index
      %c0_34 = arith.constant 0 : index
      %84 = vector.load %arg6[%c0_33, %c0_34] : memref<8x128xf32, #tpu.memory_space<vmem>>, vector<8x128xf32>
      tpu.vector_store %arg6[%c0_33, %c0_34], %83 {strides = array<i32>} : memref<8x128xf32, #tpu.memory_space<vmem>>, vector<8x128xf32>,
    } else {
    }
    %c0 = arith.constant 0 : index
    %c0_1 = arith.constant 0 : index
    %3 = vector.load %arg5[%c0, %c0_1] : memref<128x1xi32, #tpu.memory_space<vmem>>, vector<128x1xi32>
    %c1_i32 = arith.constant 1 : i32
    %4 = arith.muli %arg0, %c1_i32 : i32
    %5 = arith.addi %4, %arg1 : i32
    %c128_i32 = arith.constant 128 : i32
    %6 = arith.muli %5, %c128_i32 : i32
    %7 = tpu.iota {dimensions = array<i32: 0>} : vector<128x1xi32>
    %8 = vector.broadcast %6 : i32 to vector<128x1xi32>
    %9 = arith.addi %8, %7 : vector<128x1xi32>
    %c128_i32_2 = arith.constant 128 : i32
    %10 = vector.broadcast %c128_i32_2 : i32 to vector<128x1xi32>
    %11 = arith.cmpi slt, %9, %10 : vector<128x1xi32>
    %c0_i32_3 = arith.constant 0 : i32
    %12 = vector.broadcast %c0_i32_3 : i32 to vector<128x1xi32>
    %13 = arith.cmpi sgt, %3, %12 : vector<128x1xi32>
    %14 = arith.andi %11, %13 : vector<128x1xi1>
    %c-1_i32 = arith.constant -1 : i32
    %15 = vector.broadcast %c-1_i32 : i32 to vector<128x1xi32>
    %16 = arith.cmpi sgt, %3, %15 : vector<128x1xi32>
    %17 = arith.andi %11, %16 : vector<128x1xi1>
    %c0_4 = arith.constant 0 : index
    %c0_5 = arith.constant 0 : index
    %18 = vector.load %arg2[%c0_4, %c0_5] : memref<128x4xf32, #tpu.memory_space<vmem>>, vector<128x4xf32>
    %c0_6 = arith.constant 0 : index
    %c0_7 = arith.constant 0 : index
    %19 = vector.load %arg3[%c0_6, %c0_7] : memref<128x4xf32, #tpu.memory_space<vmem>>, vector<128x4xf32>
    %20 = arith.subf %18, %19 : vector<128x4xf32>
    %21 = math.absf %20 : vector<128x4xf32>
    %cst = arith.constant 1.000000e+00 : f32
    %22 = vector.broadcast %cst : f32 to vector<128x4xf32>
    %23 = arith.cmpf olt, %21, %22 : vector<128x4xf32>
    %cst_8 = arith.constant 5.000000e-01 : f32
    %24 = vector.broadcast %cst_8 : f32 to vector<128x4xf32>
    %25 = arith.mulf %24, %20 : vector<128x4xf32>
    %26 = arith.mulf %25, %20 : vector<128x4xf32>
    %cst_9 = arith.constant 5.000000e-01 : f32
    %27 = vector.broadcast %cst_9 : f32 to vector<128x4xf32>
    %28 = arith.subf %21, %27 : vector<128x4xf32>
    %29 = arith.select %23, %26, %28 : vector<128x4xi1>, vector<128x4xf32>
    %cst_10 = arith.constant dense<0.000000e+00> : vector<128xf32>
    %30 = vector.multi_reduction <add>, %29, %cst_10 [1] : vector<128x4xf32> to vector<128xf32>
    %31 = vector.shape_cast %30 : vector<128xf32> to vector<128x1xf32>
    %cst_11 = arith.constant 0.000000e+00 : f32
    %32 = vector.broadcast %cst_11 : f32 to vector<128x1xf32>
    %33 = arith.select %14, %31, %32 : vector<128x1xi1>, vector<128x1xf32>
    %c0_12 = arith.constant 0 : index
    %c0_13 = arith.constant 0 : index
    %34 = vector.load %arg4[%c0_12, %c0_13] : memref<128x8xf32, #tpu.memory_space<vmem>>, vector<128x8xf32>
    %cst_14 = arith.constant dense<0xFF800000> : vector<128xf32>
    %35 = vector.multi_reduction <maximumf>, %34, %cst_14 [1] : vector<128x8xf32> to vector<128xf32>
    %36 = vector.shape_cast %35 : vector<128xf32> to vector<128x1xf32>
    %37 = vector.broadcast %36 : vector<128x1xf32> to vector<128x8xf32>
    %38 = arith.subf %34, %37 : vector<128x8xf32>
    %39 = math.exp %38 : vector<128x8xf32>
    %cst_15 = arith.constant dense<0.000000e+00> : vector<128xf32>
    %40 = vector.multi_reduction <add>, %39, %cst_15 [1] : vector<128x8xf32> to vector<128xf32>
    %41 = vector.shape_cast %40 : vector<128xf32> to vector<128x1xf32>
    %42 = tpu.iota {dimensions = array<i32: 1>} : vector<128x8xi32>
    %43 = vector.broadcast %3 : vector<128x1xi32> to vector<128x8xi32>
    %44 = arith.cmpi eq, %42, %43 : vector<128x8xi32>
    %cst_16 = arith.constant 0.000000e+00 : f32
    %45 = vector.broadcast %cst_16 : f32 to vector<128x8xf32>
    %46 = arith.select %44, %39, %45 : vector<128x8xi1>, vector<128x8xf32>
    %cst_17 = arith.constant dense<0.000000e+00> : vector<128xf32>
    %47 = vector.multi_reduction <add>, %46, %cst_17 [1] : vector<128x8xf32> to vector<128xf32>
    %48 = vector.shape_cast %47 : vector<128xf32> to vector<128x1xf32>
    %49 = tpu.reciprocal %41 : vector<128x1xf32> -> vector<128x1xf32>
    %50 = arith.mulf %48, %49 : vector<128x1xf32>
    %cst_18 = arith.constant 1.000000e-07 : f32
    %cst_19 = arith.constant 0.99999988 : f32
    %51 = vector.broadcast %cst_18 : f32 to vector<128x1xf32>
    %52 = arith.maximumf %51, %50 : vector<128x1xf32>
    %53 = vector.broadcast %cst_19 : f32 to vector<128x1xf32>
    %54 = arith.minimumf %53, %52 : vector<128x1xf32>
    %cst_20 = arith.constant 1.000000e+00 : f32
    %55 = vector.broadcast %cst_20 : f32 to vector<128x1xf32>
    %56 = arith.subf %55, %54 : vector<128x1xf32>
    %57 = math.log %54 : vector<128x1xf32>
    %cst_21 = arith.constant 0.000000e+00 : f32
    %58 = vector.broadcast %cst_21 : f32 to vector<128x1xf32>
    %59 = arith.subf %58, %57 : vector<128x1xf32>
    %cst_22 = arith.constant 2.500000e-01 : f32
    %60 = vector.broadcast %cst_22 : f32 to vector<128x1xf32>
    %61 = arith.mulf %60, %59 : vector<128x1xf32>
    %62 = arith.mulf %56, %56 : vector<128x1xf32>
    %63 = arith.mulf %61, %62 : vector<128x1xf32>
    %cst_23 = arith.constant 0.000000e+00 : f32
    %64 = vector.broadcast %cst_23 : f32 to vector<128x1xf32>
    %65 = arith.select %17, %63, %64 : vector<128x1xi1>, vector<128x1xf32>
    %cst_24 = arith.constant 1.000000e+00 : f32
    %cst_25 = arith.constant 0.000000e+00 : f32
    %66 = vector.broadcast %cst_24 : f32 to vector<128x1xf32>
    %67 = vector.broadcast %cst_25 : f32 to vector<128x1xf32>
    %68 = arith.select %14, %66, %67 : vector<128x1xi1>, vector<128x1xf32>
    %69 = tpu.iota {dimensions = array<i32: 1>} : vector<128x2xi32>
    %c0_i32_26 = arith.constant 0 : i32
    %70 = vector.broadcast %c0_i32_26 : i32 to vector<128x2xi32>
    %71 = arith.cmpi eq, %69, %70 : vector<128x2xi32>
    %72 = arith.addf %33, %65 : vector<128x1xf32>
    %73 = vector.shape_cast %72 : vector<128x1xf32> to vector<128x1xf32>
    %74 = vector.broadcast %73 : vector<128x1xf32> to vector<128x2xf32>
    %75 = vector.shape_cast %68 : vector<128x1xf32> to vector<128x1xf32>
    %76 = vector.broadcast %75 : vector<128x1xf32> to vector<128x2xf32>
    %77 = arith.select %71, %74, %76 : vector<128x2xi1>, vector<128x2xf32>
    %cst_27 = arith.constant dense<0.000000e+00> : vector<2xf32>
    %78 = vector.multi_reduction <add>, %77, %cst_27 [0] : vector<128x2xf32> to vector<2xf32>
    %79 = vector.shape_cast %78 : vector<2xf32> to vector<1x2xf32>
    %c0_28 = arith.constant 0 : index
    %c0_29 = arith.constant 0 : index
    %80 = vector.load %arg6[%c0_28, %c0_29] : memref<8x128xf32, #tpu.memory_space<vmem>>, vector<1x2xf32>
    %81 = arith.addf %80, %79 : vector<1x2xf32>
    %c0_30 = arith.constant 0 : index
    %c0_31 = arith.constant 0 : index
    %82 = vector.load %arg6[%c0_30, %c0_31] : memref<8x128xf32, #tpu.memory_space<vmem>>, vector<1x2xf32>
    tpu.vector_store %arg6[%c0_30, %c0_31], %81 {strides = array<i32>} : memref<8x128xf32, #tpu.memory_space<vmem>>, vector<1x2xf32>,
    return
  }
  func.func @transform_0(%arg0: i32, %arg1: i32) -> (i32, i32) {
    %c1_i32 = arith.constant 1 : i32
    %0 = arith.muli %arg0, %c1_i32 : i32
    %1 = arith.addi %0, %arg1 : i32
    %c0_i32 = arith.constant 0 : i32
    %2 = arith.minsi %1, %c0_i32 : i32
    %c0_i32_0 = arith.constant 0 : i32
    %c0_i32_1 = arith.constant 0 : i32
    return %2, %c0_i32_0 : i32, i32
  }
  func.func @transform_1(%arg0: i32, %arg1: i32) -> (i32, i32) {
    %c1_i32 = arith.constant 1 : i32
    %0 = arith.muli %arg0, %c1_i32 : i32
    %1 = arith.addi %0, %arg1 : i32
    %c0_i32 = arith.constant 0 : i32
    %2 = arith.minsi %1, %c0_i32 : i32
    %c0_i32_0 = arith.constant 0 : i32
    %c0_i32_1 = arith.constant 0 : i32
    return %2, %c0_i32_0 : i32, i32
  }
  func.func @transform_2(%arg0: i32, %arg1: i32) -> (i32, i32) {
    %c1_i32 = arith.constant 1 : i32
    %0 = arith.muli %arg0, %c1_i32 : i32
    %1 = arith.addi %0, %arg1 : i32
    %c0_i32 = arith.constant 0 : i32
    %2 = arith.minsi %1, %c0_i32 : i32
    %c0_i32_0 = arith.constant 0 : i32
    %c0_i32_1 = arith.constant 0 : i32
    return %2, %c0_i32_0 : i32, i32
  }
  func.func @transform_3(%arg0: i32, %arg1: i32) -> (i32, i32) {
    %c1_i32 = arith.constant 1 : i32
    %0 = arith.muli %arg0, %c1_i32 : i32
    %1 = arith.addi %0, %arg1 : i32
    %c0_i32 = arith.constant 0 : i32
    %2 = arith.minsi %1, %c0_i32 : i32
    %c0_i32_0 = arith.constant 0 : i32
    %c0_i32_1 = arith.constant 0 : i32
    return %2, %c0_i32_0 : i32, i32
  }
  func.func @transform_4(%arg0: i32, %arg1: i32) -> (i32, i32) {
    %c0_i32 = arith.constant 0 : i32
    %c0_i32_0 = arith.constant 0 : i32
    return %arg0, %c0_i32 : i32, i32
  }
}

</mosaic_0001>

<llo_original>
// kernel: tpu_custom_call.1
$region0: #{tpu_custom_call.1}
  #allocation0 [shape = 'u32[]', space=smem, size = 0x4, offset = 0x4, fixed_abs, tag = 'smem constant byte address 0x4 - core index']
  #allocation1 [shape = 'u32[72,128]{1,0:T(1,128)}', space=vmem, size = 0x9000, scoped, tag = 'internal scratch']
  %s0 = inlined_call_operand.vmem [shape: f32[128,4], index: 0, kind: input, shape index: {}]
  %s1 = inlined_call_operand.vmem [shape: f32[128,4], index: 1, kind: input, shape index: {}]
  %s2 = inlined_call_operand.vmem [shape: f32[128,8], index: 2, kind: input, shape index: {}]
  %s3 = inlined_call_operand.vmem [shape: s32[128,1], index: 3, kind: input, shape index: {}]
  %s4 = inlined_call_operand.hbm [shape: f32[8,128], index: 4, kind: output, shape index: {}]
  %s5 = sld [smem:[#allocation0]]
  $region30: #{tpu_custom_call.1} parent=0
    _
  %s7 = ssub.s32 1, %s5
  %s8 = scalar_select 0, %s7, %s5
  $region1: #{tpu_custom_call.1} parent=0
    #allocation2 [shape = 'u8[4096]{0}', space=vmem, size = 0x1000, scoped, tag = 'output window, operand 0, single buffered']
    #allocation3 [shape = 's32[1]{0}', space=sflag, size = 0x4, scoped, tag = 'scoped memory for tpu_custom_call.1']
    %9 = vsyncpa [#allocation3], 0
    // Predicated region
    $region2: #{tpu_custom_call.1} parent=1 // pred_check
      _
    $region3: #{tpu_custom_call.1} parent=1 // pred_check_branch
      %11 = sbr.rel (0) target = $region5
    $region4: #{tpu_custom_call.1} parent=1 // pred_region
      %s12 = sadd.s32 0, 0
      %p13 = scmp.lt.s32.totalorder %s12, 0
      %s14 = scalar_select %p13, %s12, 0
      %s15 = smul.u32 16, %s14
      %p16 = scmp.lt.s32.totalorder %s15, 15
      %s17 = scalar_select %p16, %s15, 15
      %s18 = smul.addr %s17, 8
      %s19 = scalar_lea.vmem %s0, %s18
      %s20 = sadd.s32 0, 0
      %p21 = scmp.lt.s32.totalorder %s20, 0
      %s22 = scalar_select %p21, %s20, 0
      %s23 = smul.u32 16, %s22
    $region5: #{tpu_custom_call.1} parent=1 // pred_fallthru
      _
    // Predicated region
    $region6: #{tpu_custom_call.1} parent=1 // pred_check
      _
    $region7: #{tpu_custom_call.1} parent=1 // pred_check_branch
      %25 = sbr.rel (0) target = $region9
    $region8: #{tpu_custom_call.1} parent=1 // pred_region
      %s26 = sadd.s32 0, 0
      %p27 = scmp.lt.s32.totalorder %s26, 0
      %s28 = scalar_select %p27, %s26, 0
      %s29 = smul.u32 16, %s28
      %p30 = scmp.lt.s32.totalorder %s29, 15
      %s31 = scalar_select %p30, %s29, 15
      %s32 = smul.addr %s31, 8
      %s33 = scalar_lea.vmem %s1, %s32
      %s34 = sadd.s32 0, 0
      %p35 = scmp.lt.s32.totalorder %s34, 0
      %s36 = scalar_select %p35, %s34, 0
      %s37 = smul.u32 16, %s36
    $region9: #{tpu_custom_call.1} parent=1 // pred_fallthru
      _
    // Predicated region
    $region10: #{tpu_custom_call.1} parent=1 // pred_check
      _
    $region11: #{tpu_custom_call.1} parent=1 // pred_check_branch
      %39 = sbr.rel (0) target = $region13
    $region12: #{tpu_custom_call.1} parent=1 // pred_region
      %s40 = sadd.s32 0, 0
      %p41 = scmp.lt.s32.totalorder %s40, 0
      %s42 = scalar_select %p41, %s40, 0
      %s43 = smul.u32 16, %s42
      %p44 = scmp.lt.s32.totalorder %s43, 15
      %s45 = scalar_select %p44, %s43, 15
      %s46 = smul.addr %s45, 8
      %s47 = scalar_lea.vmem %s2, %s46
      %s48 = sadd.s32 0, 0
      %p49 = scmp.lt.s32.totalorder %s48, 0
      %s50 = scalar_select %p49, %s48, 0
      %s51 = smul.u32 16, %s50
    $region13: #{tpu_custom_call.1} parent=1 // pred_fallthru
      _
    // Predicated region
    $region14: #{tpu_custom_call.1} parent=1 // pred_check
      _
    $region15: #{tpu_custom_call.1} parent=1 // pred_check_branch
      %53 = sbr.rel (0) target = $region17
    $region16: #{tpu_custom_call.1} parent=1 // pred_region
      %s54 = sadd.s32 0, 0
      %p55 = scmp.lt.s32.totalorder %s54, 0
      %s56 = scalar_select %p55, %s54, 0
      %s57 = smul.u32 16, %s56
      %p58 = scmp.lt.s32.totalorder %s57, 15
      %s59 = scalar_select %p58, %s57, 15
      %s60 = smul.addr %s59, 8
      %s61 = scalar_lea.vmem %s3, %s60
      %s62 = sadd.s32 0, 0
      %p63 = scmp.lt.s32.totalorder %s62, 0
      %s64 = scalar_select %p63, %s62, 0
      %s65 = smul.u32 16, %s64
    $region17: #{tpu_custom_call.1} parent=1 // pred_fallthru
      _
    %s66 = sadd.s32 0, 0
    %p67 = scmp.lt.s32.totalorder %s66, 0
    %s68 = scalar_select %p67, %s66, 0
    %s69 = smul.u32 16, %s68
    %p70 = scmp.lt.s32.totalorder %s69, 15
    %s71 = scalar_select %p70, %s69, 15
    %s72 = smul.addr %s71, 8
    %s73 = scalar_lea.vmem %s0, %s72
    %s74 = sadd.s32 0, 0
    %p75 = scmp.lt.s32.totalorder %s74, 0
    %s76 = scalar_select %p75, %s74, 0
    %s77 = smul.u32 16, %s76
    %p78 = scmp.lt.s32.totalorder %s77, 15
    %s79 = scalar_select %p78, %s77, 15
    %s80 = smul.addr %s79, 8
    %s81 = scalar_lea.vmem %s1, %s80
    %s82 = sadd.s32 0, 0
    %p83 = scmp.lt.s32.totalorder %s82, 0
    %s84 = scalar_select %p83, %s82, 0
    %s85 = smul.u32 16, %s84
    %p86 = scmp.lt.s32.totalorder %s85, 15
    %s87 = scalar_select %p86, %s85, 15
    %s88 = smul.addr %s87, 8
    %s89 = scalar_lea.vmem %s2, %s88
    %s90 = sadd.s32 0, 0
    %p91 = scmp.lt.s32.totalorder %s90, 0
    %s92 = scalar_select %p91, %s90, 0
    %s93 = smul.u32 16, %s92
    %p94 = scmp.lt.s32.totalorder %s93, 15
    %s95 = scalar_select %p94, %s93, 15
    %s96 = smul.addr %s95, 8
    %s97 = scalar_lea.vmem %s3, %s96
    %s98 = sadd.s32 0, 0
    %p99 = scmp.lt.s32.totalorder %s98, 0
    %s100 = scalar_select %p99, %s98, 0
    %s101 = smul.u32 16, %s100
    %p102 = scmp.lt.s32.totalorder %s101, 15
    %s103 = scalar_select %p102, %s101, 15
    %s104 = smul.addr %s103, 8
    %s105 = scalar_lea.vmem %s0, %s104
    %s106 = sadd.s32 0, 0
    %p107 = scmp.lt.s32.totalorder %s106, 0
    %s108 = scalar_select %p107, %s106, 0
    %s109 = smul.u32 16, %s108
    %s110 = sadd.s32 0, 0
    %p111 = scmp.lt.s32.totalorder %s110, 0
    %s112 = scalar_select %p111, %s110, 0
    %s113 = smul.u32 16, %s112
    %p114 = scmp.lt.s32.totalorder %s113, 15
    %s115 = scalar_select %p114, %s113, 15
    %s116 = smul.addr %s115, 8
    %s117 = scalar_lea.vmem %s1, %s116
    %s118 = sadd.s32 0, 0
    %p119 = scmp.lt.s32.totalorder %s118, 0
    %s120 = scalar_select %p119, %s118, 0
    %s121 = smul.u32 16, %s120
    %s122 = sadd.s32 0, 0
    %p123 = scmp.lt.s32.totalorder %s122, 0
    %s124 = scalar_select %p123, %s122, 0
    %s125 = smul.u32 16, %s124
    %p126 = scmp.lt.s32.totalorder %s125, 15
    %s127 = scalar_select %p126, %s125, 15
    %s128 = smul.addr %s127, 8
    %s129 = scalar_lea.vmem %s2, %s128
    %s130 = sadd.s32 0, 0
    %p131 = scmp.lt.s32.totalorder %s130, 0
    %s132 = scalar_select %p131, %s130, 0
    %s133 = smul.u32 16, %s132
    %s134 = sadd.s32 0, 0
    %p135 = scmp.lt.s32.totalorder %s134, 0
    %s136 = scalar_select %p135, %s134, 0
    %s137 = smul.u32 16, %s136
    %p138 = scmp.lt.s32.totalorder %s137, 15
    %s139 = scalar_select %p138, %s137, 15
    %s140 = smul.addr %s139, 8
    %s141 = scalar_lea.vmem %s3, %s140
    %s142 = sadd.s32 0, 0
    %p143 = scmp.lt.s32.totalorder %s142, 0
    %s144 = scalar_select %p143, %s142, 0
    %s145 = smul.u32 16, %s144
    %p146 = scmp.eq.s32.totalorder 0, 0
    // Predicated region
    $region18: #{tpu_custom_call.1} parent=1 // pred_check
      %p147 = pneg %p146
    $region19: #{tpu_custom_call.1} parent=1 // pred_check_branch
      %149 = sbr.rel (%p147) target = $region21
    $region20: #{tpu_custom_call.1} parent=1 // pred_region
      %150 = vst [vmem:[#allocation2] sm:$0xff] 0.0
    $region21: #{tpu_custom_call.1} parent=1 // pred_fallthru
      _
    %v151 = vld [vmem:[%s141] sm:$0xff]
    %v152 = vld [vmem:[%s141 + $0x8] sm:$0xff]
    %v153 = vld [vmem:[%s141 + $0x10] sm:$0xff]
    %v154 = vld [vmem:[%s141 + $0x18] sm:$0xff]
    %v155 = vld [vmem:[%s141 + $0x20] sm:$0xff]
    %v156 = vld [vmem:[%s141 + $0x28] sm:$0xff]
    %v157 = vld [vmem:[%s141 + $0x30] sm:$0xff]
    %v158 = vld [vmem:[%s141 + $0x38] sm:$0xff]
    %v159 = vld [vmem:[%s141 + $0x40] sm:$0xff]
    %v160 = vld [vmem:[%s141 + $0x48] sm:$0xff]
    %v161 = vld [vmem:[%s141 + $0x50] sm:$0xff]
    %v162 = vld [vmem:[%s141 + $0x58] sm:$0xff]
    %v163 = vld [vmem:[%s141 + $0x60] sm:$0xff]
    %v164 = vld [vmem:[%s141 + $0x68] sm:$0xff]
    %v165 = vld [vmem:[%s141 + $0x70] sm:$0xff]
    %v166 = vld [vmem:[%s141 + $0x78] sm:$0xff]
    %s167 = sadd.s32 0, 0
    %s168 = smul.u32 %s167, 128
    %v169 = vlaneseq
    %v170 = vshrl.u32 %v169, 7
    %v171 = vadd.s32 %v170, 8
    %v172 = vadd.s32 %v170, 16
    %v173 = vadd.s32 %v170, 24
    %v174 = vadd.s32 %v170, 32
    %v175 = vadd.s32 %v170, 40
    %v176 = vadd.s32 %v170, 48
    %v177 = vadd.s32 %v170, 56
    %v178 = vadd.s32 %v170, 64
    %v179 = vadd.s32 %v170, 72
    %v180 = vadd.s32 %v170, 80
    %v181 = vadd.s32 %v170, 88
    %v182 = vadd.s32 %v170, 96
    %v183 = vadd.s32 %v170, 104
    %v184 = vadd.s32 %v170, 112
    %v185 = vadd.s32 %v170, 120
    %v186 = vstv %s168
    %v187 = vadd.s32 %v186, %v170
    %v188 = vadd.s32 %v186, %v171
    %v189 = vadd.s32 %v186, %v172
    %v190 = vadd.s32 %v186, %v173
    %v191 = vadd.s32 %v186, %v174
    %v192 = vadd.s32 %v186, %v175
    %v193 = vadd.s32 %v186, %v176
    %v194 = vadd.s32 %v186, %v177
    %v195 = vadd.s32 %v186, %v178
    %v196 = vadd.s32 %v186, %v179
    %v197 = vadd.s32 %v186, %v180
    %v198 = vadd.s32 %v186, %v181
    %v199 = vadd.s32 %v186, %v182
    %v200 = vadd.s32 %v186, %v183
    %v201 = vadd.s32 %v186, %v184
    %v202 = vadd.s32 %v186, %v185
    %vm203 = vcmp.lt.s32.totalorder %v187, 128
    %vm204 = vcmp.lt.s32.totalorder %v188, 128
    %vm205 = vcmp.lt.s32.totalorder %v189, 128
    %vm206 = vcmp.lt.s32.totalorder %v190, 128
    %vm207 = vcmp.lt.s32.totalorder %v191, 128
    %vm208 = vcmp.lt.s32.totalorder %v192, 128
    %vm209 = vcmp.lt.s32.totalorder %v193, 128
    %vm210 = vcmp.lt.s32.totalorder %v194, 128
    %vm211 = vcmp.lt.s32.totalorder %v195, 128
    %vm212 = vcmp.lt.s32.totalorder %v196, 128
    %vm213 = vcmp.lt.s32.totalorder %v197, 128
    %vm214 = vcmp.lt.s32.totalorder %v198, 128
    %vm215 = vcmp.lt.s32.totalorder %v199, 128
    %vm216 = vcmp.lt.s32.totalorder %v200, 128
    %vm217 = vcmp.lt.s32.totalorder %v201, 128
    %vm218 = vcmp.lt.s32.totalorder %v202, 128
    %vm219 = vcmp.gt.s32.totalorder %v151, 0
    %vm220 = vcmp.gt.s32.totalorder %v152, 0
    %vm221 = vcmp.gt.s32.totalorder %v153, 0
    %vm222 = vcmp.gt.s32.totalorder %v154, 0
    %vm223 = vcmp.gt.s32.totalorder %v155, 0
    %vm224 = vcmp.gt.s32.totalorder %v156, 0
    %vm225 = vcmp.gt.s32.totalorder %v157, 0
    %vm226 = vcmp.gt.s32.totalorder %v158, 0
    %vm227 = vcmp.gt.s32.totalorder %v159, 0
    %vm228 = vcmp.gt.s32.totalorder %v160, 0
    %vm229 = vcmp.gt.s32.totalorder %v161, 0
    %vm230 = vcmp.gt.s32.totalorder %v162, 0
    %vm231 = vcmp.gt.s32.totalorder %v163, 0
    %vm232 = vcmp.gt.s32.totalorder %v164, 0
    %vm233 = vcmp.gt.s32.totalorder %v165, 0
    %vm234 = vcmp.gt.s32.totalorder %v166, 0
    %vm235 = vmand %vm203, %vm219
    %vm236 = vmand %vm204, %vm220
    %vm237 = vmand %vm205, %vm221
    %vm238 = vmand %vm206, %vm222
    %vm239 = vmand %vm207, %vm223
    %vm240 = vmand %vm208, %vm224
    %vm241 = vmand %vm209, %vm225
    %vm242 = vmand %vm210, %vm226
    %vm243 = vmand %vm211, %vm227
    %vm244 = vmand %vm212, %vm228
    %vm245 = vmand %vm213, %vm229
    %vm246 = vmand %vm214, %vm230
    %vm247 = vmand %vm215, %vm231
    %vm248 = vmand %vm216, %vm232
    %vm249 = vmand %vm217, %vm233
    %vm250 = vmand %vm218, %vm234
    %vm251 = vcmp.gt.s32.totalorder %v151, 4294967295
    %vm252 = vcmp.gt.s32.totalorder %v152, 4294967295
    %vm253 = vcmp.gt.s32.totalorder %v153, 4294967295
    %vm254 = vcmp.gt.s32.totalorder %v154, 4294967295
    %vm255 = vcmp.gt.s32.totalorder %v155, 4294967295
    %vm256 = vcmp.gt.s32.totalorder %v156, 4294967295
    %vm257 = vcmp.gt.s32.totalorder %v157, 4294967295
    %vm258 = vcmp.gt.s32.totalorder %v158, 4294967295
    %vm259 = vcmp.gt.s32.totalorder %v159, 4294967295
    %vm260 = vcmp.gt.s32.totalorder %v160, 4294967295
    %vm261 = vcmp.gt.s32.totalorder %v161, 4294967295
    %vm262 = vcmp.gt.s32.totalorder %v162, 4294967295
    %vm263 = vcmp.gt.s32.totalorder %v163, 4294967295
    %vm264 = vcmp.gt.s32.totalorder %v164, 4294967295
    %vm265 = vcmp.gt.s32.totalorder %v165, 4294967295
    %vm266 = vcmp.gt.s32.totalorder %v166, 4294967295
    %vm267 = vmand %vm203, %vm251
    %vm268 = vmand %vm204, %vm252
    %vm269 = vmand %vm205, %vm253
    %vm270 = vmand %vm206, %vm254
    %vm271 = vmand %vm207, %vm255
    %vm272 = vmand %vm208, %vm256
    %vm273 = vmand %vm209, %vm257
    %vm274 = vmand %vm210, %vm258
    %vm275 = vmand %vm211, %vm259
    %vm276 = vmand %vm212, %vm260
    %vm277 = vmand %vm213, %vm261
    %vm278 = vmand %vm214, %vm262
    %vm279 = vmand %vm215, %vm263
    %vm280 = vmand %vm216, %vm264
    %vm281 = vmand %vm217, %vm265
    %vm282 = vmand %vm218, %vm266
    %v283 = vld [vmem:[%s105] sm:$0xff]
    %v284 = vld [vmem:[%s105 + $0x8] sm:$0xff]
    %v285 = vld [vmem:[%s105 + $0x10] sm:$0xff]
    %v286 = vld [vmem:[%s105 + $0x18] sm:$0xff]
    %v287 = vld [vmem:[%s105 + $0x20] sm:$0xff]
    %v288 = vld [vmem:[%s105 + $0x28] sm:$0xff]
    %v289 = vld [vmem:[%s105 + $0x30] sm:$0xff]
    %v290 = vld [vmem:[%s105 + $0x38] sm:$0xff]
    %v291 = vld [vmem:[%s105 + $0x40] sm:$0xff]
    %v292 = vld [vmem:[%s105 + $0x48] sm:$0xff]
    %v293 = vld [vmem:[%s105 + $0x50] sm:$0xff]
    %v294 = vld [vmem:[%s105 + $0x58] sm:$0xff]
    %v295 = vld [vmem:[%s105 + $0x60] sm:$0xff]
    %v296 = vld [vmem:[%s105 + $0x68] sm:$0xff]
    %v297 = vld [vmem:[%s105 + $0x70] sm:$0xff]
    %v298 = vld [vmem:[%s105 + $0x78] sm:$0xff]
    %v299 = vld [vmem:[%s117] sm:$0xff]
    %v300 = vld [vmem:[%s117 + $0x8] sm:$0xff]
    %v301 = vld [vmem:[%s117 + $0x10] sm:$0xff]
    %v302 = vld [vmem:[%s117 + $0x18] sm:$0xff]
    %v303 = vld [vmem:[%s117 + $0x20] sm:$0xff]
    %v304 = vld [vmem:[%s117 + $0x28] sm:$0xff]
    %v305 = vld [vmem:[%s117 + $0x30] sm:$0xff]
    %v306 = vld [vmem:[%s117 + $0x38] sm:$0xff]
    %v307 = vld [vmem:[%s117 + $0x40] sm:$0xff]
    %v308 = vld [vmem:[%s117 + $0x48] sm:$0xff]
    %v309 = vld [vmem:[%s117 + $0x50] sm:$0xff]
    %v310 = vld [vmem:[%s117 + $0x58] sm:$0xff]
    %v311 = vld [vmem:[%s117 + $0x60] sm:$0xff]
    %v312 = vld [vmem:[%s117 + $0x68] sm:$0xff]
    %v313 = vld [vmem:[%s117 + $0x70] sm:$0xff]
    %v314 = vld [vmem:[%s117 + $0x78] sm:$0xff]
    %v315 = vsub.f32 %v283, %v299
    %v316 = vsub.f32 %v284, %v300
    %v317 = vsub.f32 %v285, %v301
    %v318 = vsub.f32 %v286, %v302
    %v319 = vsub.f32 %v287, %v303
    %v320 = vsub.f32 %v288, %v304
    %v321 = vsub.f32 %v289, %v305
    %v322 = vsub.f32 %v290, %v306
    %v323 = vsub.f32 %v291, %v307
    %v324 = vsub.f32 %v292, %v308
    %v325 = vsub.f32 %v293, %v309
    %v326 = vsub.f32 %v294, %v310
    %v327 = vsub.f32 %v295, %v311
    %v328 = vsub.f32 %v296, %v312
    %v329 = vsub.f32 %v297, %v313
    %v330 = vsub.f32 %v298, %v314
    %v331 = vand.u32 2147483647, %v315
    %v332 = vand.u32 2147483647, %v316
    %v333 = vand.u32 2147483647, %v317
    %v334 = vand.u32 2147483647, %v318
    %v335 = vand.u32 2147483647, %v319
    %v336 = vand.u32 2147483647, %v320
    %v337 = vand.u32 2147483647, %v321
    %v338 = vand.u32 2147483647, %v322
    %v339 = vand.u32 2147483647, %v323
    %v340 = vand.u32 2147483647, %v324
    %v341 = vand.u32 2147483647, %v325
    %v342 = vand.u32 2147483647, %v326
    %v343 = vand.u32 2147483647, %v327
    %v344 = vand.u32 2147483647, %v328
    %v345 = vand.u32 2147483647, %v329
    %v346 = vand.u32 2147483647, %v330
    %vm347 = vcmp.lt.f32.partialorder %v331, 1.0
    %vm348 = vcmp.lt.f32.partialorder %v332, 1.0
    %vm349 = vcmp.lt.f32.partialorder %v333, 1.0
    %vm350 = vcmp.lt.f32.partialorder %v334, 1.0
    %vm351 = vcmp.lt.f32.partialorder %v335, 1.0
    %vm352 = vcmp.lt.f32.partialorder %v336, 1.0
    %vm353 = vcmp.lt.f32.partialorder %v337, 1.0
    %vm354 = vcmp.lt.f32.partialorder %v338, 1.0
    %vm355 = vcmp.lt.f32.partialorder %v339, 1.0
    %vm356 = vcmp.lt.f32.partialorder %v340, 1.0
    %vm357 = vcmp.lt.f32.partialorder %v341, 1.0
    %vm358 = vcmp.lt.f32.partialorder %v342, 1.0
    %vm359 = vcmp.lt.f32.partialorder %v343, 1.0
    %vm360 = vcmp.lt.f32.partialorder %v344, 1.0
    %vm361 = vcmp.lt.f32.partialorder %v345, 1.0
    %vm362 = vcmp.lt.f32.partialorder %v346, 1.0
    %v363 = vmul.f32 %v315, 0.5
    %v364 = vmul.f32 %v316, 0.5
    %v365 = vmul.f32 %v317, 0.5
    %v366 = vmul.f32 %v318, 0.5
    %v367 = vmul.f32 %v319, 0.5
    %v368 = vmul.f32 %v320, 0.5
    %v369 = vmul.f32 %v321, 0.5
    %v370 = vmul.f32 %v322, 0.5
    %v371 = vmul.f32 %v323, 0.5
    %v372 = vmul.f32 %v324, 0.5
    %v373 = vmul.f32 %v325, 0.5
    %v374 = vmul.f32 %v326, 0.5
    %v375 = vmul.f32 %v327, 0.5
    %v376 = vmul.f32 %v328, 0.5
    %v377 = vmul.f32 %v329, 0.5
    %v378 = vmul.f32 %v330, 0.5
    %v379 = vmul.f32 %v363, %v315
    %v380 = vmul.f32 %v364, %v316
    %v381 = vmul.f32 %v365, %v317
    %v382 = vmul.f32 %v366, %v318
    %v383 = vmul.f32 %v367, %v319
    %v384 = vmul.f32 %v368, %v320
    %v385 = vmul.f32 %v369, %v321
    %v386 = vmul.f32 %v370, %v322
    %v387 = vmul.f32 %v371, %v323
    %v388 = vmul.f32 %v372, %v324
    %v389 = vmul.f32 %v373, %v325
    %v390 = vmul.f32 %v374, %v326
    %v391 = vmul.f32 %v375, %v327
    %v392 = vmul.f32 %v376, %v328
    %v393 = vmul.f32 %v377, %v329
    %v394 = vmul.f32 %v378, %v330
    %v395 = vsub.f32 %v331, 0.5
    %v396 = vsub.f32 %v332, 0.5
    %v397 = vsub.f32 %v333, 0.5
    %v398 = vsub.f32 %v334, 0.5
    %v399 = vsub.f32 %v335, 0.5
    %v400 = vsub.f32 %v336, 0.5
    %v401 = vsub.f32 %v337, 0.5
    %v402 = vsub.f32 %v338, 0.5
    %v403 = vsub.f32 %v339, 0.5
    %v404 = vsub.f32 %v340, 0.5
    %v405 = vsub.f32 %v341, 0.5
    %v406 = vsub.f32 %v342, 0.5
    %v407 = vsub.f32 %v343, 0.5
    %v408 = vsub.f32 %v344, 0.5
    %v409 = vsub.f32 %v345, 0.5
    %v410 = vsub.f32 %v346, 0.5
    %v411 = vsel %vm347, %v379, %v395
    %v412 = vsel %vm348, %v380, %v396
    %v413 = vsel %vm349, %v381, %v397
    %v414 = vsel %vm350, %v382, %v398
    %v415 = vsel %vm351, %v383, %v399
    %v416 = vsel %vm352, %v384, %v400
    %v417 = vsel %vm353, %v385, %v401
    %v418 = vsel %vm354, %v386, %v402
    %v419 = vsel %vm355, %v387, %v403
    %v420 = vsel %vm356, %v388, %v404
    %v421 = vsel %vm357, %v389, %v405
    %v422 = vsel %vm358, %v390, %v406
    %v423 = vsel %vm359, %v391, %v407
    %v424 = vsel %vm360, %v392, %v408
    %v425 = vsel %vm361, %v393, %v409
    %v426 = vsel %vm362, %v394, %v410
    %vm427 = vcmask 31744
    %v428 = vsel %vm427, %v411, 0.0
    %429 = vadd.xlane.f32.xlu0 %v428
    %v430 = vpop.xlane.xlu0 %429
    %v431 = vsel %vm427, %v412, 0.0
    %432 = vadd.xlane.f32.xlu0 %v431
    %v433 = vpop.xlane.xlu0 %432
    %v434 = vsel %vm427, %v413, 0.0
    %435 = vadd.xlane.f32.xlu0 %v434
    %v436 = vpop.xlane.xlu0 %435
    %v437 = vsel %vm427, %v414, 0.0
    %438 = vadd.xlane.f32.xlu0 %v437
    %v439 = vpop.xlane.xlu0 %438
    %v440 = vsel %vm427, %v415, 0.0
    %441 = vadd.xlane.f32.xlu0 %v440
    %v442 = vpop.xlane.xlu0 %441
    %v443 = vsel %vm427, %v416, 0.0
    %444 = vadd.xlane.f32.xlu0 %v443
    %v445 = vpop.xlane.xlu0 %444
    %v446 = vsel %vm427, %v417, 0.0
    %447 = vadd.xlane.f32.xlu0 %v446
    %v448 = vpop.xlane.xlu0 %447
    %v449 = vsel %vm427, %v418, 0.0
    %450 = vadd.xlane.f32.xlu0 %v449
    %v451 = vpop.xlane.xlu0 %450
    %v452 = vsel %vm427, %v419, 0.0
    %453 = vadd.xlane.f32.xlu0 %v452
    %v454 = vpop.xlane.xlu0 %453
    %v455 = vsel %vm427, %v420, 0.0
    %456 = vadd.xlane.f32.xlu0 %v455
    %v457 = vpop.xlane.xlu0 %456
    %v458 = vsel %vm427, %v421, 0.0
    %459 = vadd.xlane.f32.xlu0 %v458
    %v460 = vpop.xlane.xlu0 %459
    %v461 = vsel %vm427, %v422, 0.0
    %462 = vadd.xlane.f32.xlu0 %v461
    %v463 = vpop.xlane.xlu0 %462
    %v464 = vsel %vm427, %v423, 0.0
    %465 = vadd.xlane.f32.xlu0 %v464
    %v466 = vpop.xlane.xlu0 %465
    %v467 = vsel %vm427, %v424, 0.0
    %468 = vadd.xlane.f32.xlu0 %v467
    %v469 = vpop.xlane.xlu0 %468
    %v470 = vsel %vm427, %v425, 0.0
    %471 = vadd.xlane.f32.xlu0 %v470
    %v472 = vpop.xlane.xlu0 %471
    %v473 = vsel %vm427, %v426, 0.0
    %474 = vadd.xlane.f32.xlu0 %v473
    %v475 = vpop.xlane.xlu0 %474
    %v476 = vsel %vm235, %v430, 0.0
    %v477 = vsel %vm236, %v433, 0.0
    %v478 = vsel %vm237, %v436, 0.0
    %v479 = vsel %vm238, %v439, 0.0
    %v480 = vsel %vm239, %v442, 0.0
    %v481 = vsel %vm240, %v445, 0.0
    %v482 = vsel %vm241, %v448, 0.0
    %v483 = vsel %vm242, %v451, 0.0
    %v484 = vsel %vm243, %v454, 0.0
    %v485 = vsel %vm244, %v457, 0.0
    %v486 = vsel %vm245, %v460, 0.0
    %v487 = vsel %vm246, %v463, 0.0
    %v488 = vsel %vm247, %v466, 0.0
    %v489 = vsel %vm248, %v469, 0.0
    %v490 = vsel %vm249, %v472, 0.0
    %v491 = vsel %vm250, %v475, 0.0
    %v492 = vld [vmem:[%s129] sm:$0xff]
    %v493 = vld [vmem:[%s129 + $0x8] sm:$0xff]
    %v494 = vld [vmem:[%s129 + $0x10] sm:$0xff]
    %v495 = vld [vmem:[%s129 + $0x18] sm:$0xff]
    %v496 = vld [vmem:[%s129 + $0x20] sm:$0xff]
    %v497 = vld [vmem:[%s129 + $0x28] sm:$0xff]
    %v498 = vld [vmem:[%s129 + $0x30] sm:$0xff]
    %v499 = vld [vmem:[%s129 + $0x38] sm:$0xff]
    %v500 = vld [vmem:[%s129 + $0x40] sm:$0xff]
    %v501 = vld [vmem:[%s129 + $0x48] sm:$0xff]
    %v502 = vld [vmem:[%s129 + $0x50] sm:$0xff]
    %v503 = vld [vmem:[%s129 + $0x58] sm:$0xff]
    %v504 = vld [vmem:[%s129 + $0x60] sm:$0xff]
    %v505 = vld [vmem:[%s129 + $0x68] sm:$0xff]
    %v506 = vld [vmem:[%s129 + $0x70] sm:$0xff]
    %v507 = vld [vmem:[%s129 + $0x78] sm:$0xff]
    %vm508 = vcmask 64512
    %v509 = vsel %vm508, %v492, -inf
    %510 = vmax.xlane.f32.xlu0 %v509
    %v511 = vpop.xlane.xlu0 %510
    %v512 = vsel %vm508, %v493, -inf
    %513 = vmax.xlane.f32.xlu0 %v512
    %v514 = vpop.xlane.xlu0 %513
    %v515 = vsel %vm508, %v494, -inf
    %516 = vmax.xlane.f32.xlu0 %v515
    %v517 = vpop.xlane.xlu0 %516
    %v518 = vsel %vm508, %v495, -inf
    %519 = vmax.xlane.f32.xlu0 %v518
    %v520 = vpop.xlane.xlu0 %519
    %v521 = vsel %vm508, %v496, -inf
    %522 = vmax.xlane.f32.xlu0 %v521
    %v523 = vpop.xlane.xlu0 %522
    %v524 = vsel %vm508, %v497, -inf
    %525 = vmax.xlane.f32.xlu0 %v524
    %v526 = vpop.xlane.xlu0 %525
    %v527 = vsel %vm508, %v498, -inf
    %528 = vmax.xlane.f32.xlu0 %v527
    %v529 = vpop.xlane.xlu0 %528
    %v530 = vsel %vm508, %v499, -inf
    %531 = vmax.xlane.f32.xlu0 %v530
    %v532 = vpop.xlane.xlu0 %531
    %v533 = vsel %vm508, %v500, -inf
    %534 = vmax.xlane.f32.xlu0 %v533
    %v535 = vpop.xlane.xlu0 %534
    %v536 = vsel %vm508, %v501, -inf
    %537 = vmax.xlane.f32.xlu0 %v536
    %v538 = vpop.xlane.xlu0 %537
    %v539 = vsel %vm508, %v502, -inf
    %540 = vmax.xlane.f32.xlu0 %v539
    %v541 = vpop.xlane.xlu0 %540
    %v542 = vsel %vm508, %v503, -inf
    %543 = vmax.xlane.f32.xlu0 %v542
    %v544 = vpop.xlane.xlu0 %543
    %v545 = vsel %vm508, %v504, -inf
    %546 = vmax.xlane.f32.xlu0 %v545
    %v547 = vpop.xlane.xlu0 %546
    %v548 = vsel %vm508, %v505, -inf
    %549 = vmax.xlane.f32.xlu0 %v548
    %v550 = vpop.xlane.xlu0 %549
    %v551 = vsel %vm508, %v506, -inf
    %552 = vmax.xlane.f32.xlu0 %v551
    %v553 = vpop.xlane.xlu0 %552
    %v554 = vsel %vm508, %v507, -inf
    %555 = vmax.xlane.f32.xlu0 %v554
    %v556 = vpop.xlane.xlu0 %555
    %v557 = vsub.f32 %v492, %v511
    %v558 = vsub.f32 %v493, %v514
    %v559 = vsub.f32 %v494, %v517
    %v560 = vsub.f32 %v495, %v520
    %v561 = vsub.f32 %v496, %v523
    %v562 = vsub.f32 %v497, %v526
    %v563 = vsub.f32 %v498, %v529
    %v564 = vsub.f32 %v499, %v532
    %v565 = vsub.f32 %v500, %v535
    %v566 = vsub.f32 %v501, %v538
    %v567 = vsub.f32 %v502, %v541
    %v568 = vsub.f32 %v503, %v544
    %v569 = vsub.f32 %v504, %v547
    %v570 = vsub.f32 %v505, %v550
    %v571 = vsub.f32 %v506, %v553
    %v572 = vsub.f32 %v507, %v556
    %v573 = vmul.f32 %v557, 1.442695
    %v574 = vpow.pop %v573
    %v575 = vmul.f32 %v558, 1.442695
    %v576 = vpow.pop %v575
    %v577 = vmul.f32 %v559, 1.442695
    %v578 = vpow.pop %v577
    %v579 = vmul.f32 %v560, 1.442695
    %v580 = vpow.pop %v579
    %v581 = vmul.f32 %v561, 1.442695
    %v582 = vpow.pop %v581
    %v583 = vmul.f32 %v562, 1.442695
    %v584 = vpow.pop %v583
    %v585 = vmul.f32 %v563, 1.442695
    %v586 = vpow.pop %v585
    %v587 = vmul.f32 %v564, 1.442695
    %v588 = vpow.pop %v587
    %v589 = vmul.f32 %v565, 1.442695
    %v590 = vpow.pop %v589
    %v591 = vmul.f32 %v566, 1.442695
    %v592 = vpow.pop %v591
    %v593 = vmul.f32 %v567, 1.442695
    %v594 = vpow.pop %v593
    %v595 = vmul.f32 %v568, 1.442695
    %v596 = vpow.pop %v595
    %v597 = vmul.f32 %v569, 1.442695
    %v598 = vpow.pop %v597
    %v599 = vmul.f32 %v570, 1.442695
    %v600 = vpow.pop %v599
    %v601 = vmul.f32 %v571, 1.442695
    %v602 = vpow.pop %v601
    %v603 = vmul.f32 %v572, 1.442695
    %v604 = vpow.pop %v603
    %v605 = vsel %vm508, %v574, 0.0
    %606 = vadd.xlane.f32.xlu0 %v605
    %v607 = vpop.xlane.xlu0 %606
    %v608 = vsel %vm508, %v576, 0.0
    %609 = vadd.xlane.f32.xlu0 %v608
    %v610 = vpop.xlane.xlu0 %609
    %v611 = vsel %vm508, %v578, 0.0
    %612 = vadd.xlane.f32.xlu0 %v611
    %v613 = vpop.xlane.xlu0 %612
    %v614 = vsel %vm508, %v580, 0.0
    %615 = vadd.xlane.f32.xlu0 %v614
    %v616 = vpop.xlane.xlu0 %615
    %v617 = vsel %vm508, %v582, 0.0
    %618 = vadd.xlane.f32.xlu0 %v617
    %v619 = vpop.xlane.xlu0 %618
    %v620 = vsel %vm508, %v584, 0.0
    %621 = vadd.xlane.f32.xlu0 %v620
    %v622 = vpop.xlane.xlu0 %621
    %v623 = vsel %vm508, %v586, 0.0
    %624 = vadd.xlane.f32.xlu0 %v623
    %v625 = vpop.xlane.xlu0 %624
    %v626 = vsel %vm508, %v588, 0.0
    %627 = vadd.xlane.f32.xlu0 %v626
    %v628 = vpop.xlane.xlu0 %627
    %v629 = vsel %vm508, %v590, 0.0
    %630 = vadd.xlane.f32.xlu0 %v629
    %v631 = vpop.xlane.xlu0 %630
    %v632 = vsel %vm508, %v592, 0.0
    %633 = vadd.xlane.f32.xlu0 %v632
    %v634 = vpop.xlane.xlu0 %633
    %v635 = vsel %vm508, %v594, 0.0
    %636 = vadd.xlane.f32.xlu0 %v635
    %v637 = vpop.xlane.xlu0 %636
    %v638 = vsel %vm508, %v596, 0.0
    %639 = vadd.xlane.f32.xlu0 %v638
    %v640 = vpop.xlane.xlu0 %639
    %v641 = vsel %vm508, %v598, 0.0
    %642 = vadd.xlane.f32.xlu0 %v641
    %v643 = vpop.xlane.xlu0 %642
    %v644 = vsel %vm508, %v600, 0.0
    %645 = vadd.xlane.f32.xlu0 %v644
    %v646 = vpop.xlane.xlu0 %645
    %v647 = vsel %vm508, %v602, 0.0
    %648 = vadd.xlane.f32.xlu0 %v647
    %v649 = vpop.xlane.xlu0 %648
    %v650 = vsel %vm508, %v604, 0.0
    %651 = vadd.xlane.f32.xlu0 %v650
    %v652 = vpop.xlane.xlu0 %651
    %v653 = vlaneseq
    %v654 = vand.u32 %v653, 127
    %655 = vset.pattern.permute.xlu0 0
    %656 = vperm.xlu0 %655, %v151
    %v657 = vpop.permute.xlu0 %656
    %658 = vset.pattern.permute.xlu0 0
    %659 = vperm.xlu0 %658, %v152
    %v660 = vpop.permute.xlu0 %659
    %661 = vset.pattern.permute.xlu0 0
    %662 = vperm.xlu0 %661, %v153
    %v663 = vpop.permute.xlu0 %662
    %664 = vset.pattern.permute.xlu0 0
    %665 = vperm.xlu0 %664, %v154
    %v666 = vpop.permute.xlu0 %665
    %667 = vset.pattern.permute.xlu0 0
    %668 = vperm.xlu0 %667, %v155
    %v669 = vpop.permute.xlu0 %668
    %670 = vset.pattern.permute.xlu0 0
    %671 = vperm.xlu0 %670, %v156
    %v672 = vpop.permute.xlu0 %671
    %673 = vset.pattern.permute.xlu0 0
    %674 = vperm.xlu0 %673, %v157
    %v675 = vpop.permute.xlu0 %674
    %676 = vset.pattern.permute.xlu0 0
    %677 = vperm.xlu0 %676, %v158
    %v678 = vpop.permute.xlu0 %677
    %679 = vset.pattern.permute.xlu0 0
    %680 = vperm.xlu0 %679, %v159
    %v681 = vpop.permute.xlu0 %680
    %682 = vset.pattern.permute.xlu0 0
    %683 = vperm.xlu0 %682, %v160
    %v684 = vpop.permute.xlu0 %683
    %685 = vset.pattern.permute.xlu0 0
    %686 = vperm.xlu0 %685, %v161
    %v687 = vpop.permute.xlu0 %686
    %688 = vset.pattern.permute.xlu0 0
    %689 = vperm.xlu0 %688, %v162
    %v690 = vpop.permute.xlu0 %689
    %691 = vset.pattern.permute.xlu0 0
    %692 = vperm.xlu0 %691, %v163
    %v693 = vpop.permute.xlu0 %692
    %694 = vset.pattern.permute.xlu0 0
    %695 = vperm.xlu0 %694, %v164
    %v696 = vpop.permute.xlu0 %695
    %697 = vset.pattern.permute.xlu0 0
    %698 = vperm.xlu0 %697, %v165
    %v699 = vpop.permute.xlu0 %698
    %700 = vset.pattern.permute.xlu0 0
    %701 = vperm.xlu0 %700, %v166
    %v702 = vpop.permute.xlu0 %701
    %vm703 = vcmp.eq.s32.totalorder %v654, %v657
    %vm704 = vcmp.eq.s32.totalorder %v654, %v660
    %vm705 = vcmp.eq.s32.totalorder %v654, %v663
    %vm706 = vcmp.eq.s32.totalorder %v654, %v666
    %vm707 = vcmp.eq.s32.totalorder %v654, %v669
    %vm708 = vcmp.eq.s32.totalorder %v654, %v672
    %vm709 = vcmp.eq.s32.totalorder %v654, %v675
    %vm710 = vcmp.eq.s32.totalorder %v654, %v678
    %vm711 = vcmp.eq.s32.totalorder %v654, %v681
    %vm712 = vcmp.eq.s32.totalorder %v654, %v684
    %vm713 = vcmp.eq.s32.totalorder %v654, %v687
    %vm714 = vcmp.eq.s32.totalorder %v654, %v690
    %vm715 = vcmp.eq.s32.totalorder %v654, %v693
    %vm716 = vcmp.eq.s32.totalorder %v654, %v696
    %vm717 = vcmp.eq.s32.totalorder %v654, %v699
    %vm718 = vcmp.eq.s32.totalorder %v654, %v702
    %v719 = vsel %vm703, %v574, 0.0
    %v720 = vsel %vm704, %v576, 0.0
    %v721 = vsel %vm705, %v578, 0.0
    %v722 = vsel %vm706, %v580, 0.0
    %v723 = vsel %vm707, %v582, 0.0
    %v724 = vsel %vm708, %v584, 0.0
    %v725 = vsel %vm709, %v586, 0.0
    %v726 = vsel %vm710, %v588, 0.0
    %v727 = vsel %vm711, %v590, 0.0
    %v728 = vsel %vm712, %v592, 0.0
    %v729 = vsel %vm713, %v594, 0.0
    %v730 = vsel %vm714, %v596, 0.0
    %v731 = vsel %vm715, %v598, 0.0
    %v732 = vsel %vm716, %v600, 0.0
    %v733 = vsel %vm717, %v602, 0.0
    %v734 = vsel %vm718, %v604, 0.0
    %v735 = vsel %vm508, %v719, 0.0
    %736 = vadd.xlane.f32.xlu0 %v735
    %v737 = vpop.xlane.xlu0 %736
    %v738 = vsel %vm508, %v720, 0.0
    %739 = vadd.xlane.f32.xlu0 %v738
    %v740 = vpop.xlane.xlu0 %739
    %v741 = vsel %vm508, %v721, 0.0
    %742 = vadd.xlane.f32.xlu0 %v741
    %v743 = vpop.xlane.xlu0 %742
    %v744 = vsel %vm508, %v722, 0.0
    %745 = vadd.xlane.f32.xlu0 %v744
    %v746 = vpop.xlane.xlu0 %745
    %v747 = vsel %vm508, %v723, 0.0
    %748 = vadd.xlane.f32.xlu0 %v747
    %v749 = vpop.xlane.xlu0 %748
    %v750 = vsel %vm508, %v724, 0.0
    %751 = vadd.xlane.f32.xlu0 %v750
    %v752 = vpop.xlane.xlu0 %751
    %v753 = vsel %vm508, %v725, 0.0
    %754 = vadd.xlane.f32.xlu0 %v753
    %v755 = vpop.xlane.xlu0 %754
    %v756 = vsel %vm508, %v726, 0.0
    %757 = vadd.xlane.f32.xlu0 %v756
    %v758 = vpop.xlane.xlu0 %757
    %v759 = vsel %vm508, %v727, 0.0
    %760 = vadd.xlane.f32.xlu0 %v759
    %v761 = vpop.xlane.xlu0 %760
    %v762 = vsel %vm508, %v728, 0.0
    %763 = vadd.xlane.f32.xlu0 %v762
    %v764 = vpop.xlane.xlu0 %763
    %v765 = vsel %vm508, %v729, 0.0
    %766 = vadd.xlane.f32.xlu0 %v765
    %v767 = vpop.xlane.xlu0 %766
    %v768 = vsel %vm508, %v730, 0.0
    %769 = vadd.xlane.f32.xlu0 %v768
    %v770 = vpop.xlane.xlu0 %769
    %v771 = vsel %vm508, %v731, 0.0
    %772 = vadd.xlane.f32.xlu0 %v771
    %v773 = vpop.xlane.xlu0 %772
    %v774 = vsel %vm508, %v732, 0.0
    %775 = vadd.xlane.f32.xlu0 %v774
    %v776 = vpop.xlane.xlu0 %775
    %v777 = vsel %vm508, %v733, 0.0
    %778 = vadd.xlane.f32.xlu0 %v777
    %v779 = vpop.xlane.xlu0 %778
    %v780 = vsel %vm508, %v734, 0.0
    %781 = vadd.xlane.f32.xlu0 %v780
    %v782 = vpop.xlane.xlu0 %781
    %v783 = vrcp.pop %v607
    %v784 = vmul.f32 %v607, %v783
    %v785 = vsub.f32 1.0, %v784
    %v786 = vmul.f32 %v783, %v785
    %v787 = vadd.f32 %v783, %v786
    %vm788 = vweird.f32 %v607
    %vm789 = vweird.f32 %v783
    %vm790 = vmor %vm788, %vm789
    %v791 = vsel %vm790, %v783, %v787
    %v792 = vand.u32 2147483647, %v607
    %vm793 = vcmp.eq.f32.partialorder %v792, 8.507059e+37
    %v794 = vand.u32 %v607, 2147483648
    %v795 = vor.u32 1.1754944e-38, %v794
    %v796 = vsel %vm793, %v795, %v791
    %v797 = vrcp.pop %v610
    %v798 = vmul.f32 %v610, %v797
    %v799 = vsub.f32 1.0, %v798
    %v800 = vmul.f32 %v797, %v799
    %v801 = vadd.f32 %v797, %v800
    %vm802 = vweird.f32 %v610
    %vm803 = vweird.f32 %v797
    %vm804 = vmor %vm802, %vm803
    %v805 = vsel %vm804, %v797, %v801
    %v806 = vand.u32 2147483647, %v610
    %vm807 = vcmp.eq.f32.partialorder %v806, 8.507059e+37
    %v808 = vand.u32 %v610, 2147483648
    %v809 = vor.u32 1.1754944e-38, %v808
    %v810 = vsel %vm807, %v809, %v805
    %v811 = vrcp.pop %v613
    %v812 = vmul.f32 %v613, %v811
    %v813 = vsub.f32 1.0, %v812
    %v814 = vmul.f32 %v811, %v813
    %v815 = vadd.f32 %v811, %v814
    %vm816 = vweird.f32 %v613
    %vm817 = vweird.f32 %v811
    %vm818 = vmor %vm816, %vm817
    %v819 = vsel %vm818, %v811, %v815
    %v820 = vand.u32 2147483647, %v613
    %vm821 = vcmp.eq.f32.partialorder %v820, 8.507059e+37
    %v822 = vand.u32 %v613, 2147483648
    %v823 = vor.u32 1.1754944e-38, %v822
    %v824 = vsel %vm821, %v823, %v819
    %v825 = vrcp.pop %v616
    %v826 = vmul.f32 %v616, %v825
    %v827 = vsub.f32 1.0, %v826
    %v828 = vmul.f32 %v825, %v827
    %v829 = vadd.f32 %v825, %v828
    %vm830 = vweird.f32 %v616
    %vm831 = vweird.f32 %v825
    %vm832 = vmor %vm830, %vm831
    %v833 = vsel %vm832, %v825, %v829
    %v834 = vand.u32 2147483647, %v616
    %vm835 = vcmp.eq.f32.partialorder %v834, 8.507059e+37
    %v836 = vand.u32 %v616, 2147483648
    %v837 = vor.u32 1.1754944e-38, %v836
    %v838 = vsel %vm835, %v837, %v833
    %v839 = vrcp.pop %v619
    %v840 = vmul.f32 %v619, %v839
    %v841 = vsub.f32 1.0, %v840
    %v842 = vmul.f32 %v839, %v841
    %v843 = vadd.f32 %v839, %v842
    %vm844 = vweird.f32 %v619
    %vm845 = vweird.f32 %v839
    %vm846 = vmor %vm844, %vm845
    %v847 = vsel %vm846, %v839, %v843
    %v848 = vand.u32 2147483647, %v619
    %vm849 = vcmp.eq.f32.partialorder %v848, 8.507059e+37
    %v850 = vand.u32 %v619, 2147483648
    %v851 = vor.u32 1.1754944e-38, %v850
    %v852 = vsel %vm849, %v851, %v847
    %v853 = vrcp.pop %v622
    %v854 = vmul.f32 %v622, %v853
    %v855 = vsub.f32 1.0, %v854
    %v856 = vmul.f32 %v853, %v855
    %v857 = vadd.f32 %v853, %v856
    %vm858 = vweird.f32 %v622
    %vm859 = vweird.f32 %v853
    %vm860 = vmor %vm858, %vm859
    %v861 = vsel %vm860, %v853, %v857
    %v862 = vand.u32 2147483647, %v622
    %vm863 = vcmp.eq.f32.partialorder %v862, 8.507059e+37
    %v864 = vand.u32 %v622, 2147483648
    %v865 = vor.u32 1.1754944e-38, %v864
    %v866 = vsel %vm863, %v865, %v861
    %v867 = vrcp.pop %v625
    %v868 = vmul.f32 %v625, %v867
    %v869 = vsub.f32 1.0, %v868
    %v870 = vmul.f32 %v867, %v869
    %v871 = vadd.f32 %v867, %v870
    %vm872 = vweird.f32 %v625
    %vm873 = vweird.f32 %v867
    %vm874 = vmor %vm872, %vm873
    %v875 = vsel %vm874, %v867, %v871
    %v876 = vand.u32 2147483647, %v625
    %vm877 = vcmp.eq.f32.partialorder %v876, 8.507059e+37
    %v878 = vand.u32 %v625, 2147483648
    %v879 = vor.u32 1.1754944e-38, %v878
    %v880 = vsel %vm877, %v879, %v875
    %v881 = vrcp.pop %v628
    %v882 = vmul.f32 %v628, %v881
    %v883 = vsub.f32 1.0, %v882
    %v884 = vmul.f32 %v881, %v883
    %v885 = vadd.f32 %v881, %v884
    %vm886 = vweird.f32 %v628
    %vm887 = vweird.f32 %v881
    %vm888 = vmor %vm886, %vm887
    %v889 = vsel %vm888, %v881, %v885
    %v890 = vand.u32 2147483647, %v628
    %vm891 = vcmp.eq.f32.partialorder %v890, 8.507059e+37
    %v892 = vand.u32 %v628, 2147483648
    %v893 = vor.u32 1.1754944e-38, %v892
    %v894 = vsel %vm891, %v893, %v889
    %v895 = vrcp.pop %v631
    %v896 = vmul.f32 %v631, %v895
    %v897 = vsub.f32 1.0, %v896
    %v898 = vmul.f32 %v895, %v897
    %v899 = vadd.f32 %v895, %v898
    %vm900 = vweird.f32 %v631
    %vm901 = vweird.f32 %v895
    %vm902 = vmor %vm900, %vm901
    %v903 = vsel %vm902, %v895, %v899
    %v904 = vand.u32 2147483647, %v631
    %vm905 = vcmp.eq.f32.partialorder %v904, 8.507059e+37
    %v906 = vand.u32 %v631, 2147483648
    %v907 = vor.u32 1.1754944e-38, %v906
    %v908 = vsel %vm905, %v907, %v903
    %v909 = vrcp.pop %v634
    %v910 = vmul.f32 %v634, %v909
    %v911 = vsub.f32 1.0, %v910
    %v912 = vmul.f32 %v909, %v911
    %v913 = vadd.f32 %v909, %v912
    %vm914 = vweird.f32 %v634
    %vm915 = vweird.f32 %v909
    %vm916 = vmor %vm914, %vm915
    %v917 = vsel %vm916, %v909, %v913
    %v918 = vand.u32 2147483647, %v634
    %vm919 = vcmp.eq.f32.partialorder %v918, 8.507059e+37
    %v920 = vand.u32 %v634, 2147483648
    %v921 = vor.u32 1.1754944e-38, %v920
    %v922 = vsel %vm919, %v921, %v917
    %v923 = vrcp.pop %v637
    %v924 = vmul.f32 %v637, %v923
    %v925 = vsub.f32 1.0, %v924
    %v926 = vmul.f32 %v923, %v925
    %v927 = vadd.f32 %v923, %v926
    %vm928 = vweird.f32 %v637
    %vm929 = vweird.f32 %v923
    %vm930 = vmor %vm928, %vm929
    %v931 = vsel %vm930, %v923, %v927
    %v932 = vand.u32 2147483647, %v637
    %vm933 = vcmp.eq.f32.partialorder %v932, 8.507059e+37
    %v934 = vand.u32 %v637, 2147483648
    %v935 = vor.u32 1.1754944e-38, %v934
    %v936 = vsel %vm933, %v935, %v931
    %v937 = vrcp.pop %v640
    %v938 = vmul.f32 %v640, %v937
    %v939 = vsub.f32 1.0, %v938
    %v940 = vmul.f32 %v937, %v939
    %v941 = vadd.f32 %v937, %v940
    %vm942 = vweird.f32 %v640
    %vm943 = vweird.f32 %v937
    %vm944 = vmor %vm942, %vm943
    %v945 = vsel %vm944, %v937, %v941
    %v946 = vand.u32 2147483647, %v640
    %vm947 = vcmp.eq.f32.partialorder %v946, 8.507059e+37
    %v948 = vand.u32 %v640, 2147483648
    %v949 = vor.u32 1.1754944e-38, %v948
    %v950 = vsel %vm947, %v949, %v945
    %v951 = vrcp.pop %v643
    %v952 = vmul.f32 %v643, %v951
    %v953 = vsub.f32 1.0, %v952
    %v954 = vmul.f32 %v951, %v953
    %v955 = vadd.f32 %v951, %v954
    %vm956 = vweird.f32 %v643
    %vm957 = vweird.f32 %v951
    %vm958 = vmor %vm956, %vm957
    %v959 = vsel %vm958, %v951, %v955
    %v960 = vand.u32 2147483647, %v643
    %vm961 = vcmp.eq.f32.partialorder %v960, 8.507059e+37
    %v962 = vand.u32 %v643, 2147483648
    %v963 = vor.u32 1.1754944e-38, %v962
    %v964 = vsel %vm961, %v963, %v959
    %v965 = vrcp.pop %v646
    %v966 = vmul.f32 %v646, %v965
    %v967 = vsub.f32 1.0, %v966
    %v968 = vmul.f32 %v965, %v967
    %v969 = vadd.f32 %v965, %v968
    %vm970 = vweird.f32 %v646
    %vm971 = vweird.f32 %v965
    %vm972 = vmor %vm970, %vm971
    %v973 = vsel %vm972, %v965, %v969
    %v974 = vand.u32 2147483647, %v646
    %vm975 = vcmp.eq.f32.partialorder %v974, 8.507059e+37
    %v976 = vand.u32 %v646, 2147483648
    %v977 = vor.u32 1.1754944e-38, %v976
    %v978 = vsel %vm975, %v977, %v973
    %v979 = vrcp.pop %v649
    %v980 = vmul.f32 %v649, %v979
    %v981 = vsub.f32 1.0, %v980
    %v982 = vmul.f32 %v979, %v981
    %v983 = vadd.f32 %v979, %v982
    %vm984 = vweird.f32 %v649
    %vm985 = vweird.f32 %v979
    %vm986 = vmor %vm984, %vm985
    %v987 = vsel %vm986, %v979, %v983
    %v988 = vand.u32 2147483647, %v649
    %vm989 = vcmp.eq.f32.partialorder %v988, 8.507059e+37
    %v990 = vand.u32 %v649, 2147483648
    %v991 = vor.u32 1.1754944e-38, %v990
    %v992 = vsel %vm989, %v991, %v987
    %v993 = vrcp.pop %v652
    %v994 = vmul.f32 %v652, %v993
    %v995 = vsub.f32 1.0, %v994
    %v996 = vmul.f32 %v993, %v995
    %v997 = vadd.f32 %v993, %v996
    %vm998 = vweird.f32 %v652
    %vm999 = vweird.f32 %v993
    %vm1000 = vmor %vm998, %vm999
    %v1001 = vsel %vm1000, %v993, %v997
    %v1002 = vand.u32 2147483647, %v652
    %vm1003 = vcmp.eq.f32.partialorder %v1002, 8.507059e+37
    %v1004 = vand.u32 %v652, 2147483648
    %v1005 = vor.u32 1.1754944e-38, %v1004
    %v1006 = vsel %vm1003, %v1005, %v1001
    %v1007 = vmul.f32 %v737, %v796
    %v1008 = vmul.f32 %v740, %v810
    %v1009 = vmul.f32 %v743, %v824
    %v1010 = vmul.f32 %v746, %v838
    %v1011 = vmul.f32 %v749, %v852
    %v1012 = vmul.f32 %v752, %v866
    %v1013 = vmul.f32 %v755, %v880
    %v1014 = vmul.f32 %v758, %v894
    %v1015 = vmul.f32 %v761, %v908
    %v1016 = vmul.f32 %v764, %v922
    %v1017 = vmul.f32 %v767, %v936
    %v1018 = vmul.f32 %v770, %v950
    %v1019 = vmul.f32 %v773, %v964
    %v1020 = vmul.f32 %v776, %v978
    %v1021 = vmul.f32 %v779, %v992
    %v1022 = vmul.f32 %v782, %v1006
    %v1023 = vmax.f32 %v1007, 1e-07
    %v1024 = vmax.f32 %v1008, 1e-07
    %v1025 = vmax.f32 %v1009, 1e-07
    %v1026 = vmax.f32 %v1010, 1e-07
    %v1027 = vmax.f32 %v1011, 1e-07
    %v1028 = vmax.f32 %v1012, 1e-07
    %v1029 = vmax.f32 %v1013, 1e-07
    %v1030 = vmax.f32 %v1014, 1e-07
    %v1031 = vmax.f32 %v1015, 1e-07
    %v1032 = vmax.f32 %v1016, 1e-07
    %v1033 = vmax.f32 %v1017, 1e-07
    %v1034 = vmax.f32 %v1018, 1e-07
    %v1035 = vmax.f32 %v1019, 1e-07
    %v1036 = vmax.f32 %v1020, 1e-07
    %v1037 = vmax.f32 %v1021, 1e-07
    %v1038 = vmax.f32 %v1022, 1e-07
    %v1039 = vmin.f32 %v1023, 0.9999999
    %v1040 = vmin.f32 %v1024, 0.9999999
    %v1041 = vmin.f32 %v1025, 0.9999999
    %v1042 = vmin.f32 %v1026, 0.9999999
    %v1043 = vmin.f32 %v1027, 0.9999999
    %v1044 = vmin.f32 %v1028, 0.9999999
    %v1045 = vmin.f32 %v1029, 0.9999999
    %v1046 = vmin.f32 %v1030, 0.9999999
    %v1047 = vmin.f32 %v1031, 0.9999999
    %v1048 = vmin.f32 %v1032, 0.9999999
    %v1049 = vmin.f32 %v1033, 0.9999999
    %v1050 = vmin.f32 %v1034, 0.9999999
    %v1051 = vmin.f32 %v1035, 0.9999999
    %v1052 = vmin.f32 %v1036, 0.9999999
    %v1053 = vmin.f32 %v1037, 0.9999999
    %v1054 = vmin.f32 %v1038, 0.9999999
    %v1055 = vsub.f32 1.0, %v1039
    %v1056 = vsub.f32 1.0, %v1040
    %v1057 = vsub.f32 1.0, %v1041
    %v1058 = vsub.f32 1.0, %v1042
    %v1059 = vsub.f32 1.0, %v1043
    %v1060 = vsub.f32 1.0, %v1044
    %v1061 = vsub.f32 1.0, %v1045
    %v1062 = vsub.f32 1.0, %v1046
    %v1063 = vsub.f32 1.0, %v1047
    %v1064 = vsub.f32 1.0, %v1048
    %v1065 = vsub.f32 1.0, %v1049
    %v1066 = vsub.f32 1.0, %v1050
    %v1067 = vsub.f32 1.0, %v1051
    %v1068 = vsub.f32 1.0, %v1052
    %v1069 = vsub.f32 1.0, %v1053
    %v1070 = vsub.f32 1.0, %v1054
    %v1071 = vlog2.pop %v1039
    %v1072 = vmul.f32 %v1071, 0.6931472
    %v1073 = vlog2.pop %v1040
    %v1074 = vmul.f32 %v1073, 0.6931472
    %v1075 = vlog2.pop %v1041
    %v1076 = vmul.f32 %v1075, 0.6931472
    %v1077 = vlog2.pop %v1042
    %v1078 = vmul.f32 %v1077, 0.6931472
    %v1079 = vlog2.pop %v1043
    %v1080 = vmul.f32 %v1079, 0.6931472
    %v1081 = vlog2.pop %v1044
    %v1082 = vmul.f32 %v1081, 0.6931472
    %v1083 = vlog2.pop %v1045
    %v1084 = vmul.f32 %v1083, 0.6931472
    %v1085 = vlog2.pop %v1046
    %v1086 = vmul.f32 %v1085, 0.6931472
    %v1087 = vlog2.pop %v1047
    %v1088 = vmul.f32 %v1087, 0.6931472
    %v1089 = vlog2.pop %v1048
    %v1090 = vmul.f32 %v1089, 0.6931472
    %v1091 = vlog2.pop %v1049
    %v1092 = vmul.f32 %v1091, 0.6931472
    %v1093 = vlog2.pop %v1050
    %v1094 = vmul.f32 %v1093, 0.6931472
    %v1095 = vlog2.pop %v1051
    %v1096 = vmul.f32 %v1095, 0.6931472
    %v1097 = vlog2.pop %v1052
    %v1098 = vmul.f32 %v1097, 0.6931472
    %v1099 = vlog2.pop %v1053
    %v1100 = vmul.f32 %v1099, 0.6931472
    %v1101 = vlog2.pop %v1054
    %v1102 = vmul.f32 %v1101, 0.6931472
    %v1103 = vsub.f32 0.0, %v1072
    %v1104 = vsub.f32 0.0, %v1074
    %v1105 = vsub.f32 0.0, %v1076
    %v1106 = vsub.f32 0.0, %v1078
    %v1107 = vsub.f32 0.0, %v1080
    %v1108 = vsub.f32 0.0, %v1082
    %v1109 = vsub.f32 0.0, %v1084
    %v1110 = vsub.f32 0.0, %v1086
    %v1111 = vsub.f32 0.0, %v1088
    %v1112 = vsub.f32 0.0, %v1090
    %v1113 = vsub.f32 0.0, %v1092
    %v1114 = vsub.f32 0.0, %v1094
    %v1115 = vsub.f32 0.0, %v1096
    %v1116 = vsub.f32 0.0, %v1098
    %v1117 = vsub.f32 0.0, %v1100
    %v1118 = vsub.f32 0.0, %v1102
    %v1119 = vmul.f32 %v1103, 0.25
    %v1120 = vmul.f32 %v1104, 0.25
    %v1121 = vmul.f32 %v1105, 0.25
    %v1122 = vmul.f32 %v1106, 0.25
    %v1123 = vmul.f32 %v1107, 0.25
    %v1124 = vmul.f32 %v1108, 0.25
    %v1125 = vmul.f32 %v1109, 0.25
    %v1126 = vmul.f32 %v1110, 0.25
    %v1127 = vmul.f32 %v1111, 0.25
    %v1128 = vmul.f32 %v1112, 0.25
    %v1129 = vmul.f32 %v1113, 0.25
    %v1130 = vmul.f32 %v1114, 0.25
    %v1131 = vmul.f32 %v1115, 0.25
    %v1132 = vmul.f32 %v1116, 0.25
    %v1133 = vmul.f32 %v1117, 0.25
    %v1134 = vmul.f32 %v1118, 0.25
    %v1135 = vmul.f32 %v1055, %v1055
    %v1136 = vmul.f32 %v1056, %v1056
    %v1137 = vmul.f32 %v1057, %v1057
    %v1138 = vmul.f32 %v1058, %v1058
    %v1139 = vmul.f32 %v1059, %v1059
    %v1140 = vmul.f32 %v1060, %v1060
    %v1141 = vmul.f32 %v1061, %v1061
    %v1142 = vmul.f32 %v1062, %v1062
    %v1143 = vmul.f32 %v1063, %v1063
    %v1144 = vmul.f32 %v1064, %v1064
    %v1145 = vmul.f32 %v1065, %v1065
    %v1146 = vmul.f32 %v1066, %v1066
    %v1147 = vmul.f32 %v1067, %v1067
    %v1148 = vmul.f32 %v1068, %v1068
    %v1149 = vmul.f32 %v1069, %v1069
    %v1150 = vmul.f32 %v1070, %v1070
    %v1151 = vmul.f32 %v1119, %v1135
    %v1152 = vmul.f32 %v1120, %v1136
    %v1153 = vmul.f32 %v1121, %v1137
    %v1154 = vmul.f32 %v1122, %v1138
    %v1155 = vmul.f32 %v1123, %v1139
    %v1156 = vmul.f32 %v1124, %v1140
    %v1157 = vmul.f32 %v1125, %v1141
    %v1158 = vmul.f32 %v1126, %v1142
    %v1159 = vmul.f32 %v1127, %v1143
    %v1160 = vmul.f32 %v1128, %v1144
    %v1161 = vmul.f32 %v1129, %v1145
    %v1162 = vmul.f32 %v1130, %v1146
    %v1163 = vmul.f32 %v1131, %v1147
    %v1164 = vmul.f32 %v1132, %v1148
    %v1165 = vmul.f32 %v1133, %v1149
    %v1166 = vmul.f32 %v1134, %v1150
    %v1167 = vsel %vm267, %v1151, 0.0
    %v1168 = vsel %vm268, %v1152, 0.0
    %v1169 = vsel %vm269, %v1153, 0.0
    %v1170 = vsel %vm270, %v1154, 0.0
    %v1171 = vsel %vm271, %v1155, 0.0
    %v1172 = vsel %vm272, %v1156, 0.0
    %v1173 = vsel %vm273, %v1157, 0.0
    %v1174 = vsel %vm274, %v1158, 0.0
    %v1175 = vsel %vm275, %v1159, 0.0
    %v1176 = vsel %vm276, %v1160, 0.0
    %v1177 = vsel %vm277, %v1161, 0.0
    %v1178 = vsel %vm278, %v1162, 0.0
    %v1179 = vsel %vm279, %v1163, 0.0
    %v1180 = vsel %vm280, %v1164, 0.0
    %v1181 = vsel %vm281, %v1165, 0.0
    %v1182 = vsel %vm282, %v1166, 0.0
    %v1183 = vsel %vm235, 1.0, 0.0
    %v1184 = vsel %vm236, 1.0, 0.0
    %v1185 = vsel %vm237, 1.0, 0.0
    %v1186 = vsel %vm238, 1.0, 0.0
    %v1187 = vsel %vm239, 1.0, 0.0
    %v1188 = vsel %vm240, 1.0, 0.0
    %v1189 = vsel %vm241, 1.0, 0.0
    %v1190 = vsel %vm242, 1.0, 0.0
    %v1191 = vsel %vm243, 1.0, 0.0
    %v1192 = vsel %vm244, 1.0, 0.0
    %v1193 = vsel %vm245, 1.0, 0.0
    %v1194 = vsel %vm246, 1.0, 0.0
    %v1195 = vsel %vm247, 1.0, 0.0
    %v1196 = vsel %vm248, 1.0, 0.0
    %v1197 = vsel %vm249, 1.0, 0.0
    %v1198 = vsel %vm250, 1.0, 0.0
    %vm1199 = vcmp.eq.s32.totalorder %v654, 0
    %v1200 = vadd.f32 %v476, %v1167
    %v1201 = vadd.f32 %v477, %v1168
    %v1202 = vadd.f32 %v478, %v1169
    %v1203 = vadd.f32 %v479, %v1170
    %v1204 = vadd.f32 %v480, %v1171
    %v1205 = vadd.f32 %v481, %v1172
    %v1206 = vadd.f32 %v482, %v1173
    %v1207 = vadd.f32 %v483, %v1174
    %v1208 = vadd.f32 %v484, %v1175
    %v1209 = vadd.f32 %v485, %v1176
    %v1210 = vadd.f32 %v486, %v1177
    %v1211 = vadd.f32 %v487, %v1178
    %v1212 = vadd.f32 %v488, %v1179
    %v1213 = vadd.f32 %v489, %v1180
    %v1214 = vadd.f32 %v490, %v1181
    %v1215 = vadd.f32 %v491, %v1182
    %1217 = vset.pattern.permute.xlu0 0
    %1218 = vperm.xlu0 %1217, %v1200
    %v1219 = vpop.permute.xlu0 %1218
    %1222 = vset.pattern.permute.xlu0 0
    %1223 = vperm.xlu0 %1222, %v1201
    %v1224 = vpop.permute.xlu0 %1223
    %1227 = vset.pattern.permute.xlu0 0
    %1228 = vperm.xlu0 %1227, %v1202
    %v1229 = vpop.permute.xlu0 %1228
    %1232 = vset.pattern.permute.xlu0 0
    %1233 = vperm.xlu0 %1232, %v1203
    %v1234 = vpop.permute.xlu0 %1233
    %1237 = vset.pattern.permute.xlu0 0
    %1238 = vperm.xlu0 %1237, %v1204
    %v1239 = vpop.permute.xlu0 %1238
    %1242 = vset.pattern.permute.xlu0 0
    %1243 = vperm.xlu0 %1242, %v1205
    %v1244 = vpop.permute.xlu0 %1243
    %1247 = vset.pattern.permute.xlu0 0
    %1248 = vperm.xlu0 %1247, %v1206
    %v1249 = vpop.permute.xlu0 %1248
    %1252 = vset.pattern.permute.xlu0 0
    %1253 = vperm.xlu0 %1252, %v1207
    %v1254 = vpop.permute.xlu0 %1253
    %1257 = vset.pattern.permute.xlu0 0
    %1258 = vperm.xlu0 %1257, %v1208
    %v1259 = vpop.permute.xlu0 %1258
    %1262 = vset.pattern.permute.xlu0 0
    %1263 = vperm.xlu0 %1262, %v1209
    %v1264 = vpop.permute.xlu0 %1263
    %1267 = vset.pattern.permute.xlu0 0
    %1268 = vperm.xlu0 %1267, %v1210
    %v1269 = vpop.permute.xlu0 %1268
    %1272 = vset.pattern.permute.xlu0 0
    %1273 = vperm.xlu0 %1272, %v1211
    %v1274 = vpop.permute.xlu0 %1273
    %1277 = vset.pattern.permute.xlu0 0
    %1278 = vperm.xlu0 %1277, %v1212
    %v1279 = vpop.permute.xlu0 %1278
    %1282 = vset.pattern.permute.xlu0 0
    %1283 = vperm.xlu0 %1282, %v1213
    %v1284 = vpop.permute.xlu0 %1283
    %1287 = vset.pattern.permute.xlu0 0
    %1288 = vperm.xlu0 %1287, %v1214
    %v1289 = vpop.permute.xlu0 %1288
    %1292 = vset.pattern.permute.xlu0 0
    %1293 = vperm.xlu0 %1292, %v1215
    %v1294 = vpop.permute.xlu0 %1293
    %1297 = vset.pattern.permute.xlu0 0
    %1298 = vperm.xlu0 %1297, %v1183
    %v1299 = vpop.permute.xlu0 %1298
    %1302 = vset.pattern.permute.xlu0 0
    %1303 = vperm.xlu0 %1302, %v1184
    %v1304 = vpop.permute.xlu0 %1303
    %1307 = vset.pattern.permute.xlu0 0
    %1308 = vperm.xlu0 %1307, %v1185
    %v1309 = vpop.permute.xlu0 %1308
    %1312 = vset.pattern.permute.xlu0 0
    %1313 = vperm.xlu0 %1312, %v1186
    %v1314 = vpop.permute.xlu0 %1313
    %1317 = vset.pattern.permute.xlu0 0
    %1318 = vperm.xlu0 %1317, %v1187
    %v1319 = vpop.permute.xlu0 %1318
    %1322 = vset.pattern.permute.xlu0 0
    %1323 = vperm.xlu0 %1322, %v1188
    %v1324 = vpop.permute.xlu0 %1323
    %1327 = vset.pattern.permute.xlu0 0
    %1328 = vperm.xlu0 %1327, %v1189
    %v1329 = vpop.permute.xlu0 %1328
    %1332 = vset.pattern.permute.xlu0 0
    %1333 = vperm.xlu0 %1332, %v1190
    %v1334 = vpop.permute.xlu0 %1333
    %1337 = vset.pattern.permute.xlu0 0
    %1338 = vperm.xlu0 %1337, %v1191
    %v1339 = vpop.permute.xlu0 %1338
    %1342 = vset.pattern.permute.xlu0 0
    %1343 = vperm.xlu0 %1342, %v1192
    %v1344 = vpop.permute.xlu0 %1343
    %1347 = vset.pattern.permute.xlu0 0
    %1348 = vperm.xlu0 %1347, %v1193
    %v1349 = vpop.permute.xlu0 %1348
    %1352 = vset.pattern.permute.xlu0 0
    %1353 = vperm.xlu0 %1352, %v1194
    %v1354 = vpop.permute.xlu0 %1353
    %1357 = vset.pattern.permute.xlu0 0
    %1358 = vperm.xlu0 %1357, %v1195
    %v1359 = vpop.permute.xlu0 %1358
    %1362 = vset.pattern.permute.xlu0 0
    %1363 = vperm.xlu0 %1362, %v1196
    %v1364 = vpop.permute.xlu0 %1363
    %1367 = vset.pattern.permute.xlu0 0
    %1368 = vperm.xlu0 %1367, %v1197
    %v1369 = vpop.permute.xlu0 %1368
    %1372 = vset.pattern.permute.xlu0 0
    %1373 = vperm.xlu0 %1372, %v1198
    %v1374 = vpop.permute.xlu0 %1373
    %v1376 = vsel %vm1199, %v1219, %v1299
    %v1377 = vsel %vm1199, %v1224, %v1304
    %v1378 = vsel %vm1199, %v1229, %v1309
    %v1379 = vsel %vm1199, %v1234, %v1314
    %v1380 = vsel %vm1199, %v1239, %v1319
    %v1381 = vsel %vm1199, %v1244, %v1324
    %v1382 = vsel %vm1199, %v1249, %v1329
    %v1383 = vsel %vm1199, %v1254, %v1334
    %v1384 = vsel %vm1199, %v1259, %v1339
    %v1385 = vsel %vm1199, %v1264, %v1344
    %v1386 = vsel %vm1199, %v1269, %v1349
    %v1387 = vsel %vm1199, %v1274, %v1354
    %v1388 = vsel %vm1199, %v1279, %v1359
    %v1389 = vsel %vm1199, %v1284, %v1364
    %v1390 = vsel %vm1199, %v1289, %v1369
    %v1391 = vsel %vm1199, %v1294, %v1374
    %vm1392 = vcmask 15360
    %v1393 = vsel %vm1392, %v1376, 0.0
    %v1394 = vsel %vm1392, %v1377, 0.0
    %v1395 = vadd.f32 %v1393, %v1394
    %v1396 = vsel %vm1392, %v1378, 0.0
    %v1397 = vadd.f32 %v1395, %v1396
    %v1398 = vsel %vm1392, %v1379, 0.0
    %v1399 = vadd.f32 %v1397, %v1398
    %v1400 = vsel %vm1392, %v1380, 0.0
    %v1401 = vadd.f32 %v1399, %v1400
    %v1402 = vsel %vm1392, %v1381, 0.0
    %v1403 = vadd.f32 %v1401, %v1402
    %v1404 = vsel %vm1392, %v1382, 0.0
    %v1405 = vadd.f32 %v1403, %v1404
    %v1406 = vsel %vm1392, %v1383, 0.0
    %v1407 = vadd.f32 %v1405, %v1406
    %v1408 = vsel %vm1392, %v1384, 0.0
    %v1409 = vadd.f32 %v1407, %v1408
    %v1410 = vsel %vm1392, %v1385, 0.0
    %v1411 = vadd.f32 %v1409, %v1410
    %v1412 = vsel %vm1392, %v1386, 0.0
    %v1413 = vadd.f32 %v1411, %v1412
    %v1414 = vsel %vm1392, %v1387, 0.0
    %v1415 = vadd.f32 %v1413, %v1414
    %v1416 = vsel %vm1392, %v1388, 0.0
    %v1417 = vadd.f32 %v1415, %v1416
    %v1418 = vsel %vm1392, %v1389, 0.0
    %v1419 = vadd.f32 %v1417, %v1418
    %v1420 = vsel %vm1392, %v1390, 0.0
    %v1421 = vadd.f32 %v1419, %v1420
    %v1422 = vsel %vm1392, %v1391, 0.0
    %v1423 = vadd.f32 %v1421, %v1422
    %v1424 = vrot.slane %v1423, 4
    %v1425 = vadd.f32 %v1423, %v1424
    %v1426 = vrot.slane %v1425, 2
    %v1427 = vadd.f32 %v1425, %v1426
    %v1428 = vrot.slane %v1427, 1
    %v1429 = vadd.f32 %v1427, %v1428
    %v1430 = vld [vmem:[#allocation2] sm:$0x1]
    %v1431 = vadd.f32 %v1430, %v1429
    %vm1432 = vcmask 8192
    %1433 = vst.msk [vmem:[#allocation2] sm:$0x1] %vm1432, %v1431
    // Predicated region
    $region22: #{tpu_custom_call.1} parent=1 // pred_check
      _
    $region23: #{tpu_custom_call.1} parent=1 // pred_check_branch
      %1435 = sbr.rel (0) target = $region25
    $region24: #{tpu_custom_call.1} parent=1 // pred_region
      %1437 = vsyncadd [#allocation3], 0
      %s1439 = sshll.u32 [#allocation2], 4
      %s1440 = int_to_ptr.vmem [resolvable:$true] %s1439
      %s1441 = sshll.u32 %s4, 4
      %s1442 = int_to_ptr.hbm [resolvable:$true] %s1441
      %1444 = dma.vmem_to_hbm [thread:$0]  %s1440, 128, %s1442, [#allocation3]
    $region25: #{tpu_custom_call.1} parent=1 // pred_fallthru
      _
    // Predicated region
    $region26: #{tpu_custom_call.1} parent=1 // pred_check
      _
    $region27: #{tpu_custom_call.1} parent=1 // pred_check_branch
      %1446 = sbr.rel (0) target = $region29
    $region28: #{tpu_custom_call.1} parent=1 // pred_region
      %1448 = dma.done [#allocation3], 128
    $region29: #{tpu_custom_call.1} parent=1 // pred_fallthru
      _
    %1449 = vsyncpa [#allocation3], 1

</llo_original>
